<compile_context>
chip_gen: v5e
topology: v5e:2x2
jax: 0.10.0
libtpu: 0.0.40
codegen_flags: <defaults>
</compile_context>

<pallas_src>
import functools

import jax
import jax.numpy as jnp
from jax.experimental import pallas as pl
from jax.experimental.pallas import tpu as pltpu


def _ceil_to(v, m):
    return ((v + m - 1) // m) * m


def model_kernel(x_ref, we_ref, wvu_ref, wwt_ref, wp_ref, b_ref,
                 out_ref, m_sc, l_sc, acc_sc, *,
                 n_valid, n_padded, tile_n, embed_dim, hidden_dim, num_classes,
                 off_be, off_bvu, off_bw, off_bp):
    i = pl.program_id(0)

    @pl.when(i == 0)
    def _init():
        m_sc[...] = jnp.full_like(m_sc, -jnp.inf)
        l_sc[...] = jnp.zeros_like(l_sc)
        acc_sc[...] = jnp.zeros_like(acc_sc)

    x = x_ref[...]                                           # (TN, D_in)
    b_e = b_ref[:, off_be:off_be + embed_dim]                # (1, E)
    b_vu = b_ref[:, off_bvu:off_bvu + 2 * hidden_dim]        # (1, 2H)
    b_w = b_ref[:, off_bw:off_bw + 1]                        # (1, 1)

    # Embedding.
    a = jnp.dot(x, we_ref[...], preferred_element_type=jnp.float32) + b_e     # (TN, E)

    # Fused v/u projections: one (E, 2H) matmul, then split the halves.
    vu = jnp.dot(a, wvu_ref[...], preferred_element_type=jnp.float32) + b_vu  # (TN, 2H)
    v = jnp.tanh(vu[:, :hidden_dim])
    u = jax.nn.sigmoid(vu[:, hidden_dim:])
    g = v * u                                                # (TN, H)

    # Attention logit (output_dim == 1): lane-dense reduce over H against a
    # (1, H) weight row instead of a (H, 1) lane-sparse matmul.
    w = jax.nn.sigmoid(
        jnp.sum(g * wwt_ref[...], axis=1, keepdims=True) + b_w)               # (TN, 1)

    # Mask padded instance rows (only traced when padding exists).
    if n_padded != n_valid:
        row = i * tile_n + jax.lax.broadcasted_iota(jnp.int32, (tile_n, 1), 0)
        w = jnp.where(row < n_valid, w, -jnp.inf)

    # Online softmax over the instance axis (dim 0 of the whole bag).
    m_prev = m_sc[...]                                        # (1, 1)
    m_new = jnp.maximum(m_prev, jnp.max(w, axis=0, keepdims=True))
    alpha = jnp.exp(m_prev - m_new)                           # (1, 1)
    p = jnp.exp(w - m_new)                                    # (TN, 1); masked rows -> 0
    l_sc[...] = alpha * l_sc[...] + jnp.sum(p, axis=0, keepdims=True)
    # s.T @ a without transposing s: broadcast multiply + sublane reduction.
    acc_sc[...] = alpha * acc_sc[...] + jnp.sum(p * a, axis=0, keepdims=True)
    m_sc[...] = m_new

    @pl.when(i == pl.num_programs(0) - 1)
    def _finalize():
        att = acc_sc[...] * pl.reciprocal(l_sc[...], approx=True)             # (1, E)
        b_p = b_ref[:, off_bp:off_bp + num_classes]                           # (1, C)
        out_ref[...] = (
            jnp.dot(att, wp_ref[...], preferred_element_type=jnp.float32) + b_p)


@functools.partial(jax.jit, static_argnames=("tile_n",))
def model_forward(x, we, be, wv, bv, wu, bu, ww, bw, wp, bp, tile_n=128):
    # x: (1, N, D_in) as in the PyTorch module; squeeze the leading batch dim.
    x2d = jnp.squeeze(x, axis=0) if x.ndim == 3 else x
    n, d_in = x2d.shape
    e = we.shape[1]
    h = wv.shape[1]
    c = wp.shape[1]
    assert ww.shape == (h, 1), "Model uses attention output_dim == 1"

    # Fuse the v/u projection weights/biases.
    wvu = jnp.concatenate([wv, wu], axis=1)                  # (E, 2H)
    bvu = jnp.concatenate([bv, bu], axis=1)                  # (1, 2H)
    wwt = ww.reshape(1, h)                                   # (1, H)

    # Pack all biases into one lane-aligned (1, B) array (fewer tiny DMAs).
    off_be = 0
    off_bvu = _ceil_to(e, 128)
    off_bw = off_bvu + _ceil_to(2 * h, 128)
    off_bp = off_bw + 128
    b_total = off_bp + _ceil_to(c, 128)
    biases = jnp.zeros((1, b_total), jnp.float32)
    biases = biases.at[:, off_be:off_be + e].set(be)
    biases = biases.at[:, off_bvu:off_bvu + 2 * h].set(bvu)
    biases = biases.at[:, off_bw:off_bw + 1].set(bw)
    biases = biases.at[:, off_bp:off_bp + c].set(bp)

    # Pad the instance axis up to a multiple of the tile size.
    n_padded = _ceil_to(max(n, 1), tile_n)
    if n_padded != n:
        x2d = jnp.pad(x2d, ((0, n_padded - n), (0, 0)))
    grid = (n_padded // tile_n,)

    kernel = functools.partial(
        model_kernel,
        n_valid=n, n_padded=n_padded, tile_n=tile_n,
        embed_dim=e, hidden_dim=h, num_classes=c,
        off_be=off_be, off_bvu=off_bvu, off_bw=off_bw, off_bp=off_bp)

    cost = pl.CostEstimate(
        flops=2 * n * (d_in * e + e * 2 * h + 2 * h + e) + 2 * e * c,
        transcendentals=n * (2 * h + 2),
        bytes_accessed=4 * (n_padded * d_in + d_in * e + e * 2 * h + h
                            + e * c + b_total + c))

    return pl.pallas_call(
        kernel,
        out_shape=jax.ShapeDtypeStruct((1, c), jnp.float32),
        grid_spec=pltpu.PrefetchScalarGridSpec(
            num_scalar_prefetch=0,
            grid=grid,
            in_specs=[
                pl.BlockSpec((tile_n, d_in), lambda i: (i, 0)),   # x tile (pipelined)
                pl.BlockSpec((d_in, e), lambda i: (0, 0)),        # We     (resident)
                pl.BlockSpec((e, 2 * h), lambda i: (0, 0)),       # Wv||Wu (resident)
                pl.BlockSpec((1, h), lambda i: (0, 0)),           # Ww^T   (resident)
                pl.BlockSpec((e, c), lambda i: (0, 0)),           # Wp     (resident)
                pl.BlockSpec((1, b_total), lambda i: (0, 0)),     # packed biases
            ],
            out_specs=pl.BlockSpec((1, c), lambda i: (0, 0)),
            scratch_shapes=[
                pltpu.VMEM((1, 1), jnp.float32),    # running max
                pltpu.VMEM((1, 1), jnp.float32),    # running softmax denominator
                pltpu.VMEM((1, e), jnp.float32),    # running weighted-sum accumulator
            ],
        ),
        compiler_params=pltpu.CompilerParams(
            dimension_semantics=("arbitrary",),     # N axis carries the softmax reduction
            vmem_limit_bytes=32 * 1024 * 1024,      # safe on v5e/v6e/v7x for these tiles
        ),
        cost_estimate=cost,
    )(x2d, we, wvu, wwt, wp, biases)


def model_reference(x, we, be, wv, bv, wu, bu, ww, bw, wp, bp):
    x2d = jnp.squeeze(x, axis=0)
    a = x2d @ we + be
    v = jnp.tanh(a @ wv + bv)
    u = jax.nn.sigmoid(a @ wu + bu)
    w = jax.nn.sigmoid((v * u) @ ww + bw)
    s = jax.nn.softmax(w, axis=0).T
    att = s @ a
    return att @ wp + bp


if __name__ == "__main__":
    # Module defaults: input_dim=768, embed_dim=64, hidden=4*embed=256, classes=4.
    # N=500 (not a multiple of the tile) exercises the padded/masked path.
    N, INPUT_DIM, EMBED_DIM, NUM_CLASSES = 500, 768, 64, 4
    HIDDEN_DIM = EMBED_DIM * 4

    key = jax.random.PRNGKey(0)
    keys = jax.random.split(key, 11)
    x  = jax.random.normal(keys[0], (1, N, INPUT_DIM), jnp.float32)
    we = jax.random.normal(keys[1], (INPUT_DIM, EMBED_DIM), jnp.float32) * 0.05
    be = jax.random.normal(keys[2], (1, EMBED_DIM), jnp.float32) * 0.05
    wv = jax.random.normal(keys[3], (EMBED_DIM, HIDDEN_DIM), jnp.float32) * 0.05
    bv = jax.random.normal(keys[4], (1, HIDDEN_DIM), jnp.float32) * 0.05
    wu = jax.random.normal(keys[5], (EMBED_DIM, HIDDEN_DIM), jnp.float32) * 0.05
    bu = jax.random.normal(keys[6], (1, HIDDEN_DIM), jnp.float32) * 0.05
    ww = jax.random.normal(keys[7], (HIDDEN_DIM, 1), jnp.float32) * 0.05
    bw = jax.random.normal(keys[8], (1, 1), jnp.float32) * 0.05
    wp = jax.random.normal(keys[9], (EMBED_DIM, NUM_CLASSES), jnp.float32) * 0.05
    bp = jax.random.normal(keys[10], (1, NUM_CLASSES), jnp.float32) * 0.05

    out = model_forward(x, we, be, wv, bv, wu, bu, ww, bw, wp, bp)
    out = jax.block_until_ready(out)

    ref = model_reference(x, we, be, wv, bv, wu, bu, ww, bw, wp, bp)
    assert out.shape == (1, NUM_CLASSES), out.shape
    # Tolerance covers the approx (EUP) reciprocal in the softmax normalization.
    assert jnp.allclose(out, ref, atol=2e-3, rtol=2e-3), (out, ref)

    print("KERNEL_OK")
</pallas_src>

<mosaic_0001>
module attributes {stable_mosaic.version = 11 : i64} {
  func.func @model_kernel(%arg0: i32, %arg1: memref<128x768xf32, #tpu.memory_space<vmem>>, %arg2: memref<768x64xf32, #tpu.memory_space<vmem>>, %arg3: memref<64x512xf32, #tpu.memory_space<vmem>>, %arg4: memref<1x256xf32, #tpu.memory_space<vmem>>, %arg5: memref<64x4xf32, #tpu.memory_space<vmem>>, %arg6: memref<1x896xf32, #tpu.memory_space<vmem>>, %arg7: memref<1x4xf32, #tpu.memory_space<vmem>>, %arg8: memref<1x1xf32, #tpu.memory_space<vmem>>, %arg9: memref<1x1xf32, #tpu.memory_space<vmem>>, %arg10: memref<1x64xf32, #tpu.memory_space<vmem>>) attributes {dimension_semantics = [#tpu.dimension_semantics<arbitrary>], iteration_bounds = array<i64: 4>, scalar_prefetch = 0 : i64, scratch_operands = 3 : i64, tpu.core_type = #tpu.core_type<tc>, window_params = [{transform_indices = @transform_0, window_bounds = array<i64: 128, 768>}, {pipeline_mode = #tpu.pipeline_mode<synchronous>, transform_indices = @transform_1, window_bounds = array<i64: 768, 64>}, {pipeline_mode = #tpu.pipeline_mode<synchronous>, transform_indices = @transform_2, window_bounds = array<i64: 64, 512>}, {pipeline_mode = #tpu.pipeline_mode<synchronous>, transform_indices = @transform_3, window_bounds = array<i64: 1, 256>}, {pipeline_mode = #tpu.pipeline_mode<synchronous>, transform_indices = @transform_4, window_bounds = array<i64: 64, 4>}, {pipeline_mode = #tpu.pipeline_mode<synchronous>, transform_indices = @transform_5, window_bounds = array<i64: 1, 896>}, {pipeline_mode = #tpu.pipeline_mode<synchronous>, transform_indices = @transform_6, window_bounds = array<i64: 1, 4>}]} {
    %c0_i32 = arith.constant 0 : i32
    %0 = arith.cmpi eq, %arg0, %c0_i32 : i32
    %1 = arith.extui %0 : i1 to i32
    %c0_i32_0 = arith.constant 0 : i32
    %2 = arith.cmpi ne, %1, %c0_i32_0 : i32
    scf.if %2 {
      %cst_33 = arith.constant 0xFF800000 : f32
      %72 = vector.broadcast %cst_33 : f32 to vector<1x1xf32>
      %c0_34 = arith.constant 0 : index
      %c0_35 = arith.constant 0 : index
      %73 = vector.load %arg8[%c0_34, %c0_35] : memref<1x1xf32, #tpu.memory_space<vmem>>, vector<1x1xf32>
      tpu.vector_store %arg8[%c0_34, %c0_35], %72 {strides = array<i32>} : memref<1x1xf32, #tpu.memory_space<vmem>>, vector<1x1xf32>,
      %cst_36 = arith.constant 0.000000e+00 : f32
      %74 = vector.broadcast %cst_36 : f32 to vector<1x1xf32>
      %c0_37 = arith.constant 0 : index
      %c0_38 = arith.constant 0 : index
      %75 = vector.load %arg9[%c0_37, %c0_38] : memref<1x1xf32, #tpu.memory_space<vmem>>, vector<1x1xf32>
      tpu.vector_store %arg9[%c0_37, %c0_38], %74 {strides = array<i32>} : memref<1x1xf32, #tpu.memory_space<vmem>>, vector<1x1xf32>,
      %cst_39 = arith.constant 0.000000e+00 : f32
      %76 = vector.broadcast %cst_39 : f32 to vector<1x64xf32>
      %c0_40 = arith.constant 0 : index
      %c0_41 = arith.constant 0 : index
      %77 = vector.load %arg10[%c0_40, %c0_41] : memref<1x64xf32, #tpu.memory_space<vmem>>, vector<1x64xf32>
      tpu.vector_store %arg10[%c0_40, %c0_41], %76 {strides = array<i32>} : memref<1x64xf32, #tpu.memory_space<vmem>>, vector<1x64xf32>,
    } else {
    }
    %c0 = arith.constant 0 : index
    %c0_1 = arith.constant 0 : index
    %3 = vector.load %arg1[%c0, %c0_1] : memref<128x768xf32, #tpu.memory_space<vmem>>, vector<128x768xf32>
    %c0_2 = arith.constant 0 : index
    %c0_3 = arith.constant 0 : index
    %4 = vector.load %arg6[%c0_2, %c0_3] : memref<1x896xf32, #tpu.memory_space<vmem>>, vector<1x64xf32>
    %c0_4 = arith.constant 0 : index
    %c128 = arith.constant 128 : index
    %5 = vector.load %arg6[%c0_4, %c128] : memref<1x896xf32, #tpu.memory_space<vmem>>, vector<1x512xf32>
    %c0_5 = arith.constant 0 : index
    %c640 = arith.constant 640 : index
    %6 = vector.load %arg6[%c0_5, %c640] : memref<1x896xf32, #tpu.memory_space<vmem>>, vector<1x1xf32>
    %c0_6 = arith.constant 0 : index
    %c0_7 = arith.constant 0 : index
    %7 = vector.load %arg2[%c0_6, %c0_7] : memref<768x64xf32, #tpu.memory_space<vmem>>, vector<768x64xf32>
    %cst = arith.constant dense<0.000000e+00> : vector<128x64xf32>
    %8 = tpu.matmul %3, %7, %cst {dimension_numbers = #tpu.dot_dimension_numbers<[1], [0], [0], [1], [0, 0, 1, 1], [], []>} : vector<128x768xf32>, vector<768x64xf32>, vector<128x64xf32> -> vector<128x64xf32>
    %9 = vector.broadcast %4 : vector<1x64xf32> to vector<128x64xf32>
    %10 = arith.addf %8, %9 : vector<128x64xf32>
    %c0_8 = arith.constant 0 : index
    %c0_9 = arith.constant 0 : index
    %11 = vector.load %arg3[%c0_8, %c0_9] : memref<64x512xf32, #tpu.memory_space<vmem>>, vector<64x512xf32>
    %cst_10 = arith.constant dense<0.000000e+00> : vector<128x512xf32>
    %12 = tpu.matmul %10, %11, %cst_10 {dimension_numbers = #tpu.dot_dimension_numbers<[1], [0], [0], [1], [0, 0, 1, 1], [], []>} : vector<128x64xf32>, vector<64x512xf32>, vector<128x512xf32> -> vector<128x512xf32>
    %13 = vector.broadcast %5 : vector<1x512xf32> to vector<128x512xf32>
    %14 = arith.addf %12, %13 : vector<128x512xf32>
    %15 = vector.extract_strided_slice %14 {offsets = [0, 0], sizes = [128, 256], strides = [1, 1]} : vector<128x512xf32> to vector<128x256xf32>
    %16 = math.tanh %15 : vector<128x256xf32>
    %17 = vector.extract_strided_slice %14 {offsets = [0, 256], sizes = [128, 256], strides = [1, 1]} : vector<128x512xf32> to vector<128x256xf32>
    %18 = arith.negf %17 : vector<128x256xf32>
    %19 = math.exp %18 : vector<128x256xf32>
    %cst_11 = arith.constant 1.000000e+00 : f32
    %20 = vector.broadcast %cst_11 : f32 to vector<128x256xf32>
    %21 = arith.addf %20, %19 : vector<128x256xf32>
    %22 = arith.divf %20, %21 : vector<128x256xf32>
    %23 = arith.mulf %16, %22 : vector<128x256xf32>
    %c0_12 = arith.constant 0 : index
    %c0_13 = arith.constant 0 : index
    %24 = vector.load %arg4[%c0_12, %c0_13] : memref<1x256xf32, #tpu.memory_space<vmem>>, vector<1x256xf32>
    %25 = vector.broadcast %24 : vector<1x256xf32> to vector<128x256xf32>
    %26 = arith.mulf %23, %25 : vector<128x256xf32>
    %cst_14 = arith.constant dense<0.000000e+00> : vector<128xf32>
    %27 = vector.multi_reduction <add>, %26, %cst_14 [1] : vector<128x256xf32> to vector<128xf32>
    %28 = vector.shape_cast %27 : vector<128xf32> to vector<128x1xf32>
    %29 = vector.broadcast %6 : vector<1x1xf32> to vector<128x1xf32>
    %30 = arith.addf %28, %29 : vector<128x1xf32>
    %31 = arith.negf %30 : vector<128x1xf32>
    %32 = math.exp %31 : vector<128x1xf32>
    %cst_15 = arith.constant 1.000000e+00 : f32
    %33 = vector.broadcast %cst_15 : f32 to vector<128x1xf32>
    %34 = arith.addf %33, %32 : vector<128x1xf32>
    %35 = arith.divf %33, %34 : vector<128x1xf32>
    %c128_i32 = arith.constant 128 : i32
    %36 = arith.muli %arg0, %c128_i32 : i32
    %37 = tpu.iota {dimensions = array<i32: 0>} : vector<128x1xi32>
    %38 = vector.broadcast %36 : i32 to vector<128x1xi32>
    %39 = arith.addi %38, %37 : vector<128x1xi32>
    %c500_i32 = arith.constant 500 : i32
    %40 = vector.broadcast %c500_i32 : i32 to vector<128x1xi32>
    %41 = arith.cmpi slt, %39, %40 : vector<128x1xi32>
    %cst_16 = arith.constant 0xFF800000 : f32
    %42 = vector.broadcast %cst_16 : f32 to vector<128x1xf32>
    %43 = arith.select %41, %35, %42 : vector<128x1xi1>, vector<128x1xf32>
    %c0_17 = arith.constant 0 : index
    %c0_18 = arith.constant 0 : index
    %44 = vector.load %arg8[%c0_17, %c0_18] : memref<1x1xf32, #tpu.memory_space<vmem>>, vector<1x1xf32>
    %cst_19 = arith.constant dense<0xFF800000> : vector<1xf32>
    %45 = vector.multi_reduction <maximumf>, %43, %cst_19 [0] : vector<128x1xf32> to vector<1xf32>
    %46 = vector.shape_cast %45 : vector<1xf32> to vector<1x1xf32>
    %47 = arith.maximumf %44, %46 : vector<1x1xf32>
    %48 = arith.subf %44, %47 : vector<1x1xf32>
    %49 = math.exp %48 : vector<1x1xf32>
    %50 = vector.broadcast %47 : vector<1x1xf32> to vector<128x1xf32>
    %51 = arith.subf %43, %50 : vector<128x1xf32>
    %52 = math.exp %51 : vector<128x1xf32>
    %c0_20 = arith.constant 0 : index
    %c0_21 = arith.constant 0 : index
    %53 = vector.load %arg9[%c0_20, %c0_21] : memref<1x1xf32, #tpu.memory_space<vmem>>, vector<1x1xf32>
    %54 = arith.mulf %49, %53 : vector<1x1xf32>
    %cst_22 = arith.constant dense<0.000000e+00> : vector<1xf32>
    %55 = vector.multi_reduction <add>, %52, %cst_22 [0] : vector<128x1xf32> to vector<1xf32>
    %56 = vector.shape_cast %55 : vector<1xf32> to vector<1x1xf32>
    %57 = arith.addf %54, %56 : vector<1x1xf32>
    %c0_23 = arith.constant 0 : index
    %c0_24 = arith.constant 0 : index
    %58 = vector.load %arg9[%c0_23, %c0_24] : memref<1x1xf32, #tpu.memory_space<vmem>>, vector<1x1xf32>
    tpu.vector_store %arg9[%c0_23, %c0_24], %57 {strides = array<i32>} : memref<1x1xf32, #tpu.memory_space<vmem>>, vector<1x1xf32>,
    %c0_25 = arith.constant 0 : index
    %c0_26 = arith.constant 0 : index
    %59 = vector.load %arg10[%c0_25, %c0_26] : memref<1x64xf32, #tpu.memory_space<vmem>>, vector<1x64xf32>
    %60 = vector.broadcast %49 : vector<1x1xf32> to vector<1x64xf32>
    %61 = arith.mulf %60, %59 : vector<1x64xf32>
    %62 = vector.broadcast %52 : vector<128x1xf32> to vector<128x64xf32>
    %63 = arith.mulf %62, %10 : vector<128x64xf32>
    %cst_27 = arith.constant dense<0.000000e+00> : vector<64xf32>
    %64 = vector.multi_reduction <add>, %63, %cst_27 [0] : vector<128x64xf32> to vector<64xf32>
    %65 = vector.shape_cast %64 : vector<64xf32> to vector<1x64xf32>
    %66 = arith.addf %61, %65 : vector<1x64xf32>
    %c0_28 = arith.constant 0 : index
    %c0_29 = arith.constant 0 : index
    %67 = vector.load %arg10[%c0_28, %c0_29] : memref<1x64xf32, #tpu.memory_space<vmem>>, vector<1x64xf32>
    tpu.vector_store %arg10[%c0_28, %c0_29], %66 {strides = array<i32>} : memref<1x64xf32, #tpu.memory_space<vmem>>, vector<1x64xf32>,
    %c0_30 = arith.constant 0 : index
    %c0_31 = arith.constant 0 : index
    %68 = vector.load %arg8[%c0_30, %c0_31] : memref<1x1xf32, #tpu.memory_space<vmem>>, vector<1x1xf32>
    tpu.vector_store %arg8[%c0_30, %c0_31], %47 {strides = array<i32>} : memref<1x1xf32, #tpu.memory_space<vmem>>, vector<1x1xf32>,
    %c3_i32 = arith.constant 3 : i32
    %69 = arith.cmpi eq, %arg0, %c3_i32 : i32
    %70 = arith.extui %69 : i1 to i32
    %c0_i32_32 = arith.constant 0 : i32
    %71 = arith.cmpi ne, %70, %c0_i32_32 : i32
    scf.if %71 {
      %c0_33 = arith.constant 0 : index
      %c0_34 = arith.constant 0 : index
      %72 = vector.load %arg10[%c0_33, %c0_34] : memref<1x64xf32, #tpu.memory_space<vmem>>, vector<1x64xf32>
      %c0_35 = arith.constant 0 : index
      %c0_36 = arith.constant 0 : index
      %73 = vector.load %arg9[%c0_35, %c0_36] : memref<1x1xf32, #tpu.memory_space<vmem>>, vector<1x1xf32>
      %74 = tpu.reciprocal %73 {approx = true} : vector<1x1xf32> -> vector<1x1xf32>
      %75 = vector.broadcast %74 : vector<1x1xf32> to vector<1x64xf32>
      %76 = arith.mulf %72, %75 : vector<1x64xf32>
      %c0_37 = arith.constant 0 : index
      %c768 = arith.constant 768 : index
      %77 = vector.load %arg6[%c0_37, %c768] : memref<1x896xf32, #tpu.memory_space<vmem>>, vector<1x4xf32>
      %c0_38 = arith.constant 0 : index
      %c0_39 = arith.constant 0 : index
      %78 = vector.load %arg5[%c0_38, %c0_39] : memref<64x4xf32, #tpu.memory_space<vmem>>, vector<64x4xf32>
      %cst_40 = arith.constant dense<0.000000e+00> : vector<1x4xf32>
      %79 = tpu.matmul %76, %78, %cst_40 {dimension_numbers = #tpu.dot_dimension_numbers<[1], [0], [0], [1], [0, 0, 1, 1], [], []>} : vector<1x64xf32>, vector<64x4xf32>, vector<1x4xf32> -> vector<1x4xf32>
      %80 = arith.addf %79, %77 : vector<1x4xf32>
      %c0_41 = arith.constant 0 : index
      %c0_42 = arith.constant 0 : index
      %81 = vector.load %arg7[%c0_41, %c0_42] : memref<1x4xf32, #tpu.memory_space<vmem>>, vector<1x4xf32>
      tpu.vector_store %arg7[%c0_41, %c0_42], %80 {strides = array<i32>} : memref<1x4xf32, #tpu.memory_space<vmem>>, vector<1x4xf32>,
    } else {
    }
    return
  }
  func.func @transform_0(%arg0: i32) -> (i32, i32) {
    %c0_i32 = arith.constant 0 : i32
    %c0_i32_0 = arith.constant 0 : i32
    return %arg0, %c0_i32 : i32, i32
  }
  func.func @transform_1(%arg0: i32) -> (i32, i32) {
    %c0_i32 = arith.constant 0 : i32
    %c0_i32_0 = arith.constant 0 : i32
    %c0_i32_1 = arith.constant 0 : i32
    return %c0_i32, %c0_i32_0 : i32, i32
  }
  func.func @transform_2(%arg0: i32) -> (i32, i32) {
    %c0_i32 = arith.constant 0 : i32
    %c0_i32_0 = arith.constant 0 : i32
    %c0_i32_1 = arith.constant 0 : i32
    return %c0_i32, %c0_i32_0 : i32, i32
  }
  func.func @transform_3(%arg0: i32) -> (i32, i32) {
    %c0_i32 = arith.constant 0 : i32
    %c0_i32_0 = arith.constant 0 : i32
    %c0_i32_1 = arith.constant 0 : i32
    return %c0_i32, %c0_i32_0 : i32, i32
  }
  func.func @transform_4(%arg0: i32) -> (i32, i32) {
    %c0_i32 = arith.constant 0 : i32
    %c0_i32_0 = arith.constant 0 : i32
    %c0_i32_1 = arith.constant 0 : i32
    return %c0_i32, %c0_i32_0 : i32, i32
  }
  func.func @transform_5(%arg0: i32) -> (i32, i32) {
    %c0_i32 = arith.constant 0 : i32
    %c0_i32_0 = arith.constant 0 : i32
    %c0_i32_1 = arith.constant 0 : i32
    return %c0_i32, %c0_i32_0 : i32, i32
  }
  func.func @transform_6(%arg0: i32) -> (i32, i32) {
    %c0_i32 = arith.constant 0 : i32
    %c0_i32_0 = arith.constant 0 : i32
    %c0_i32_1 = arith.constant 0 : i32
    return %c0_i32, %c0_i32_0 : i32, i32
  }
}

</mosaic_0001>

<llo_original>
// kernel: model_forward.1
$region0: #{model_forward.1}
  #allocation0 [shape = 'u32[]', space=smem, size = 0x4, offset = 0x4, fixed_abs, tag = 'smem constant byte address 0x4 - core index']
  #allocation1 [shape = 'u32[72,128]{1,0:T(1,128)}', space=vmem, size = 0x9000, scoped, tag = 'internal scratch']
  #allocation2 [shape = 'f32[1,1]{1,0:T(1,128)}', space=vmem, size = 0x200, scoped, tag = 'scratch operand']
  #allocation3 [shape = 'f32[1,1]{1,0:T(1,128)}', space=vmem, size = 0x200, scoped, tag = 'scratch operand']
  #allocation4 [shape = 'f32[1,64]{1,0:T(1,128)}', space=vmem, size = 0x200, scoped, tag = 'scratch operand']
  %s0 = inlined_call_operand.vmem [shape: f32[512,768], index: 0, kind: input, shape index: {}]
  %s1 = inlined_call_operand.vmem [shape: f32[768,64], index: 1, kind: input, shape index: {}]
  %s2 = inlined_call_operand.vmem [shape: f32[64,512], index: 2, kind: input, shape index: {}]
  %s3 = inlined_call_operand.vmem [shape: f32[1,256], index: 3, kind: input, shape index: {}]
  %s4 = inlined_call_operand.vmem [shape: f32[64,4], index: 4, kind: input, shape index: {}]
  %s5 = inlined_call_operand.vmem [shape: f32[1,896], index: 5, kind: input, shape index: {}]
  %s6 = inlined_call_operand.hbm [shape: f32[1,4], index: 6, kind: output, shape index: {}]
  %s7 = sld [smem:[#allocation0]]
  $region65: #{model_forward.1} parent=0
    _
  %s9 = ssub.s32 1, %s7
  %s10 = scalar_select 0, %s9, %s7
  $region1: #{model_forward.1} parent=0
    #allocation5 [shape = 'u8[512]{0}', space=vmem, size = 0x400, scoped, tag = 'output window, operand 0, single buffered']
    #allocation6 [shape = 's32[2]{0}', space=sflag, size = 0x8, scoped, tag = 'scoped memory for model_forward.1']
    %11 = vsyncpa [#allocation6], 0
    loop: start=0, step=1, limit=6
    $region2: #{model_forward.1} parent=1 // loop_pre_header
      _
    $region3: #{model_forward.1} parent=1 // loop_header
      %s13 = sphi 0, %s17
      %p14 = scmp.ge.s32.totalorder %s13, 6
      %s23 = sphi 0, %s25
      %s26 = sphi 0, %s23
      %s27 = sphi 0, %s26
      %s43 = sphi 0, %s27
      %s47 = sphi 0, %s47
      %s49 = sphi 0, %s47
      %s50 = sphi 0, %s49
      %s64 = sphi 0, %s50
      %s68 = sphi 0, %s68
      %s70 = sphi 0, %s68
      %s71 = sphi 0, %s70
      %s85 = sphi 0, %s71
      %s89 = sphi 0, %s89
      %s91 = sphi 0, %s89
      %s92 = sphi 0, %s91
      %s106 = sphi 0, %s92
      %s110 = sphi 0, %s110
      %s112 = sphi 0, %s110
      %s113 = sphi 0, %s112
      %s127 = sphi 0, %s113
      %s131 = sphi 0, %s131
      %s133 = sphi 0, %s131
      %s134 = sphi 0, %s133
      %s148 = sphi 0, %s134
      %s152 = sphi 0, %s152
      %s154 = sphi 0, %s152
      %s155 = sphi 0, %s154
      %s169 = sphi 0, %s155
    $region4: #{model_forward.1} parent=1 // loop_header_branch
      %16 = sbr.rel (%p14) target = $region8
    $region5: #{model_forward.1} parent=1 // loop_body
      %s18 = ssub.s32 %s13, 1
      %s19 = ssub.s32 %s13, 2
      %s20 = sadd.s32 %s13, 1
      %s21 = ssub.s32 %s13, %s20
      %p22 = scmp.eq.s32.totalorder %s21, 0
      %s24 = sadd.s32 %s23, 1
      %s25 = scalar_select %p22, %s23, %s24
      %p28 = pneg %p22
      %p29 = scmp.eq.s32.totalorder %s13, 3
      %p30 = por %p28, %p29
      %p31 = scmp.ne.s32.totalorder %s23, %s26
      %p32 = scmp.eq.s32.totalorder %s13, 0
      %p33 = por %p31, %p32
      %p34 = scmp.ne.s32.totalorder %s23, %s26
      %p35 = scmp.eq.s32.totalorder %s18, 3
      %p36 = por %p34, %p35
      %p37 = scmp.ne.s32.totalorder %s26, %s27
      %p38 = scmp.eq.s32.totalorder %s18, 0
      %p39 = por %p37, %p38
      %p40 = scmp.ne.s32.totalorder %s26, %s27
      %p41 = scmp.eq.s32.totalorder %s19, 3
      %p42 = por %p40, %p41
      %p44 = scmp.ne.s32.totalorder %s27, %s43
      %p45 = scmp.eq.s32.totalorder %s19, 0
      %p46 = por %p44, %p45
      %s48 = sadd.s32 %s47, 1
      %p51 = scmp.eq.s32.totalorder %s13, 3
      %p52 = scmp.ne.s32.totalorder %s47, %s49
      %p53 = scmp.eq.s32.totalorder %s13, 0
      %p54 = por %p52, %p53
      %p55 = scmp.ne.s32.totalorder %s47, %s49
      %p56 = scmp.eq.s32.totalorder %s18, 3
      %p57 = por %p55, %p56
      %p58 = scmp.ne.s32.totalorder %s49, %s50
      %p59 = scmp.eq.s32.totalorder %s18, 0
      %p60 = por %p58, %p59
      %p61 = scmp.ne.s32.totalorder %s49, %s50
      %p62 = scmp.eq.s32.totalorder %s19, 3
      %p63 = por %p61, %p62
      %p65 = scmp.ne.s32.totalorder %s50, %s64
      %p66 = scmp.eq.s32.totalorder %s19, 0
      %p67 = por %p65, %p66
      %s69 = sadd.s32 %s68, 1
      %p72 = scmp.eq.s32.totalorder %s13, 3
      %p73 = scmp.ne.s32.totalorder %s68, %s70
      %p74 = scmp.eq.s32.totalorder %s13, 0
      %p75 = por %p73, %p74
      %p76 = scmp.ne.s32.totalorder %s68, %s70
      %p77 = scmp.eq.s32.totalorder %s18, 3
      %p78 = por %p76, %p77
      %p79 = scmp.ne.s32.totalorder %s70, %s71
      %p80 = scmp.eq.s32.totalorder %s18, 0
      %p81 = por %p79, %p80
      %p82 = scmp.ne.s32.totalorder %s70, %s71
      %p83 = scmp.eq.s32.totalorder %s19, 3
      %p84 = por %p82, %p83
      %p86 = scmp.ne.s32.totalorder %s71, %s85
      %p87 = scmp.eq.s32.totalorder %s19, 0
      %p88 = por %p86, %p87
      %s90 = sadd.s32 %s89, 1
      %p93 = scmp.eq.s32.totalorder %s13, 3
      %p94 = scmp.ne.s32.totalorder %s89, %s91
      %p95 = scmp.eq.s32.totalorder %s13, 0
      %p96 = por %p94, %p95
      %p97 = scmp.ne.s32.totalorder %s89, %s91
      %p98 = scmp.eq.s32.totalorder %s18, 3
      %p99 = por %p97, %p98
      %p100 = scmp.ne.s32.totalorder %s91, %s92
      %p101 = scmp.eq.s32.totalorder %s18, 0
      %p102 = por %p100, %p101
      %p103 = scmp.ne.s32.totalorder %s91, %s92
      %p104 = scmp.eq.s32.totalorder %s19, 3
      %p105 = por %p103, %p104
      %p107 = scmp.ne.s32.totalorder %s92, %s106
      %p108 = scmp.eq.s32.totalorder %s19, 0
      %p109 = por %p107, %p108
      %s111 = sadd.s32 %s110, 1
      %p114 = scmp.eq.s32.totalorder %s13, 3
      %p115 = scmp.ne.s32.totalorder %s110, %s112
      %p116 = scmp.eq.s32.totalorder %s13, 0
      %p117 = por %p115, %p116
      %p118 = scmp.ne.s32.totalorder %s110, %s112
      %p119 = scmp.eq.s32.totalorder %s18, 3
      %p120 = por %p118, %p119
      %p121 = scmp.ne.s32.totalorder %s112, %s113
      %p122 = scmp.eq.s32.totalorder %s18, 0
      %p123 = por %p121, %p122
      %p124 = scmp.ne.s32.totalorder %s112, %s113
      %p125 = scmp.eq.s32.totalorder %s19, 3
      %p126 = por %p124, %p125
      %p128 = scmp.ne.s32.totalorder %s113, %s127
      %p129 = scmp.eq.s32.totalorder %s19, 0
      %p130 = por %p128, %p129
      %s132 = sadd.s32 %s131, 1
      %p135 = scmp.eq.s32.totalorder %s13, 3
      %p136 = scmp.ne.s32.totalorder %s131, %s133
      %p137 = scmp.eq.s32.totalorder %s13, 0
      %p138 = por %p136, %p137
      %p139 = scmp.ne.s32.totalorder %s131, %s133
      %p140 = scmp.eq.s32.totalorder %s18, 3
      %p141 = por %p139, %p140
      %p142 = scmp.ne.s32.totalorder %s133, %s134
      %p143 = scmp.eq.s32.totalorder %s18, 0
      %p144 = por %p142, %p143
      %p145 = scmp.ne.s32.totalorder %s133, %s134
      %p146 = scmp.eq.s32.totalorder %s19, 3
      %p147 = por %p145, %p146
      %p149 = scmp.ne.s32.totalorder %s134, %s148
      %p150 = scmp.eq.s32.totalorder %s19, 0
      %p151 = por %p149, %p150
      %s153 = sadd.s32 %s152, 1
      %p156 = scmp.eq.s32.totalorder %s13, 3
      %p157 = scmp.ne.s32.totalorder %s152, %s154
      %p158 = scmp.eq.s32.totalorder %s13, 0
      %p159 = por %p157, %p158
      %p160 = scmp.ne.s32.totalorder %s152, %s154
      %p161 = scmp.eq.s32.totalorder %s18, 3
      %p162 = por %p160, %p161
      %p163 = scmp.ne.s32.totalorder %s154, %s155
      %p164 = scmp.eq.s32.totalorder %s18, 0
      %p165 = por %p163, %p164
      %p166 = scmp.ne.s32.totalorder %s154, %s155
      %p167 = scmp.eq.s32.totalorder %s19, 3
      %p168 = por %p166, %p167
      %p170 = scmp.ne.s32.totalorder %s155, %s169
      %p171 = scmp.eq.s32.totalorder %s19, 0
      %p172 = por %p170, %p171
      %p173 = scmp.le.s32.totalorder 1, %s13
      %p174 = scmp.lt.s32.totalorder %s13, 5
      %p175 = pnand %p173, %p174
      %p176 = pneg %p175
      // Predicated region
      $region9: #{model_forward.1} parent=5 // pred_check
        _
      $region10: #{model_forward.1} parent=5 // pred_check_branch
        %178 = sbr.rel (%p175) target = $region12
      $region11: #{model_forward.1} parent=5 // pred_region
        %s179 = ssub.s32 %s13, 1
        // Predicated region
        $region13: #{model_forward.1} parent=11 // pred_check
          %p180 = pneg %p60
        $region14: #{model_forward.1} parent=11 // pred_check_branch
          %182 = sbr.rel (%p180) target = $region16
        $region15: #{model_forward.1} parent=11 // pred_region
          _
        $region16: #{model_forward.1} parent=11 // pred_fallthru
          _
        // Predicated region
        $region17: #{model_forward.1} parent=11 // pred_check
          %p183 = pneg %p81
        $region18: #{model_forward.1} parent=11 // pred_check_branch
          %185 = sbr.rel (%p183) target = $region20
        $region19: #{model_forward.1} parent=11 // pred_region
          _
        $region20: #{model_forward.1} parent=11 // pred_fallthru
          _
        // Predicated region
        $region21: #{model_forward.1} parent=11 // pred_check
          %p186 = pneg %p102
        $region22: #{model_forward.1} parent=11 // pred_check_branch
          %188 = sbr.rel (%p186) target = $region24
        $region23: #{model_forward.1} parent=11 // pred_region
          _
        $region24: #{model_forward.1} parent=11 // pred_fallthru
          _
        // Predicated region
        $region25: #{model_forward.1} parent=11 // pred_check
          %p189 = pneg %p123
        $region26: #{model_forward.1} parent=11 // pred_check_branch
          %191 = sbr.rel (%p189) target = $region28
        $region27: #{model_forward.1} parent=11 // pred_region
          _
        $region28: #{model_forward.1} parent=11 // pred_fallthru
          _
        // Predicated region
        $region29: #{model_forward.1} parent=11 // pred_check
          %p192 = pneg %p144
        $region30: #{model_forward.1} parent=11 // pred_check_branch
          %194 = sbr.rel (%p192) target = $region32
        $region31: #{model_forward.1} parent=11 // pred_region
          _
        $region32: #{model_forward.1} parent=11 // pred_fallthru
          _
      $region12: #{model_forward.1} parent=5 // pred_fallthru
        _
      %p195 = scmp.lt.s32.totalorder %s13, 4
      // Predicated region
      $region33: #{model_forward.1} parent=5 // pred_check
        %p196 = pneg %p195
      $region34: #{model_forward.1} parent=5 // pred_check_branch
        %198 = sbr.rel (%p196) target = $region36
      $region35: #{model_forward.1} parent=5 // pred_region
        // Predicated region
        $region37: #{model_forward.1} parent=35 // pred_check
          %p199 = pneg %p33
        $region38: #{model_forward.1} parent=35 // pred_check_branch
          %201 = sbr.rel (%p199) target = $region40
        $region39: #{model_forward.1} parent=35 // pred_region
          %s202 = smul.u32 16, %s13
          %p203 = scmp.lt.s32.totalorder %s202, 63
          %s204 = scalar_select %p203, %s202, 63
          %s205 = smul.addr %s204, 6
          %s206 = smul.addr %s205, 8
          %s207 = scalar_lea.vmem %s0, %s206
          %s208 = smul.u32 16, %s13
        $region40: #{model_forward.1} parent=35 // pred_fallthru
          _
      $region36: #{model_forward.1} parent=5 // pred_fallthru
        _
      %p209 = scmp.le.s32.totalorder 1, %s13
      %p210 = scmp.lt.s32.totalorder %s13, 5
      %p211 = pnand %p209, %p210
      %p212 = pneg %p211
      // Predicated region
      $region41: #{model_forward.1} parent=5 // pred_check
        _
      $region42: #{model_forward.1} parent=5 // pred_check_branch
        %214 = sbr.rel (%p211) target = $region44
      $region43: #{model_forward.1} parent=5 // pred_region
        %s215 = ssub.s32 %s13, 1
        %s216 = smul.u32 16, %s18
        %p217 = scmp.lt.s32.totalorder %s216, 63
        %s218 = scalar_select %p217, %s216, 63
        %s219 = smul.addr %s218, 6
        %s220 = smul.addr %s219, 8
        %s221 = scalar_lea.vmem %s0, %s220
        %p222 = pneg %p39
        %p223 = pneg %p36
        %p224 = pneg %p60
        %p225 = pneg %p57
        %p226 = pneg %p81
        %p227 = pneg %p78
        %p228 = pneg %p102
        %p229 = pneg %p99
        %p230 = pneg %p123
        %p231 = pneg %p120
        %p232 = pneg %p144
        %p233 = pneg %p141
        %p234 = pneg %p165
        %p235 = pneg %p162
        %s236 = smul.u32 16, %s18
        %p237 = scmp.lt.s32.totalorder %s236, 63
        %s238 = scalar_select %p237, %s236, 63
        %s239 = smul.addr %s238, 6
        %s240 = smul.addr %s239, 8
        %s241 = scalar_lea.vmem %s0, %s240
        %s242 = smul.u32 16, %s18
        %p243 = scmp.eq.s32.totalorder %s18, 0
        // Predicated region
        $region45: #{model_forward.1} parent=43 // pred_check
          %p244 = pneg %p243
        $region46: #{model_forward.1} parent=43 // pred_check_branch
          %246 = sbr.rel (%p244) target = $region48
        $region47: #{model_forward.1} parent=43 // pred_region
          %vm247 = vcmask 0
          %248 = vst.msk [vmem:[#allocation2] sm:$0x1] %vm247, -inf
          %249 = vst.msk [vmem:[#allocation3] sm:$0x1] %vm247, 0.0
          %vm250 = vcmask 516096
          %251 = vst.msk [vmem:[#allocation4] sm:$0x1] %vm250, 0.0
        $region48: #{model_forward.1} parent=43 // pred_fallthru
          _
        %v252 = vld [vmem:[%s241] sm:$0xff]
        %v253 = vld [vmem:[%s241 + $0x8] sm:$0xff]
        %v254 = vld [vmem:[%s241 + $0x10] sm:$0xff]
        %v255 = vld [vmem:[%s241 + $0x18] sm:$0xff]
        %v256 = vld [vmem:[%s241 + $0x20] sm:$0xff]
        %v257 = vld [vmem:[%s241 + $0x28] sm:$0xff]
        %v258 = vld [vmem:[%s241 + $0x30] sm:$0xff]
        %v259 = vld [vmem:[%s241 + $0x38] sm:$0xff]
        %v260 = vld [vmem:[%s241 + $0x40] sm:$0xff]
        %v261 = vld [vmem:[%s241 + $0x48] sm:$0xff]
        %v262 = vld [vmem:[%s241 + $0x50] sm:$0xff]
        %v263 = vld [vmem:[%s241 + $0x58] sm:$0xff]
        %v264 = vld [vmem:[%s241 + $0x60] sm:$0xff]
        %v265 = vld [vmem:[%s241 + $0x68] sm:$0xff]
        %v266 = vld [vmem:[%s241 + $0x70] sm:$0xff]
        %v267 = vld [vmem:[%s241 + $0x78] sm:$0xff]
        %v268 = vld [vmem:[%s241 + $0x80] sm:$0xff]
        %v269 = vld [vmem:[%s241 + $0x88] sm:$0xff]
        %v270 = vld [vmem:[%s241 + $0x90] sm:$0xff]
        %v271 = vld [vmem:[%s241 + $0x98] sm:$0xff]
        %v272 = vld [vmem:[%s241 + $0xa0] sm:$0xff]
        %v273 = vld [vmem:[%s241 + $0xa8] sm:$0xff]
        %v274 = vld [vmem:[%s241 + $0xb0] sm:$0xff]
        %v275 = vld [vmem:[%s241 + $0xb8] sm:$0xff]
        %v276 = vld [vmem:[%s241 + $0xc0] sm:$0xff]
        %v277 = vld [vmem:[%s241 + $0xc8] sm:$0xff]
        %v278 = vld [vmem:[%s241 + $0xd0] sm:$0xff]
        %v279 = vld [vmem:[%s241 + $0xd8] sm:$0xff]
        %v280 = vld [vmem:[%s241 + $0xe0] sm:$0xff]
        %v281 = vld [vmem:[%s241 + $0xe8] sm:$0xff]
        %v282 = vld [vmem:[%s241 + $0xf0] sm:$0xff]
        %v283 = vld [vmem:[%s241 + $0xf8] sm:$0xff]
        %v284 = vld [vmem:[%s241 + $0x100] sm:$0xff]
        %v285 = vld [vmem:[%s241 + $0x108] sm:$0xff]
        %v286 = vld [vmem:[%s241 + $0x110] sm:$0xff]
        %v287 = vld [vmem:[%s241 + $0x118] sm:$0xff]
        %v288 = vld [vmem:[%s241 + $0x120] sm:$0xff]
        %v289 = vld [vmem:[%s241 + $0x128] sm:$0xff]
        %v290 = vld [vmem:[%s241 + $0x130] sm:$0xff]
        %v291 = vld [vmem:[%s241 + $0x138] sm:$0xff]
        %v292 = vld [vmem:[%s241 + $0x140] sm:$0xff]
        %v293 = vld [vmem:[%s241 + $0x148] sm:$0xff]
        %v294 = vld [vmem:[%s241 + $0x150] sm:$0xff]
        %v295 = vld [vmem:[%s241 + $0x158] sm:$0xff]
        %v296 = vld [vmem:[%s241 + $0x160] sm:$0xff]
        %v297 = vld [vmem:[%s241 + $0x168] sm:$0xff]
        %v298 = vld [vmem:[%s241 + $0x170] sm:$0xff]
        %v299 = vld [vmem:[%s241 + $0x178] sm:$0xff]
        %v300 = vld [vmem:[%s241 + $0x180] sm:$0xff]
        %v301 = vld [vmem:[%s241 + $0x188] sm:$0xff]
        %v302 = vld [vmem:[%s241 + $0x190] sm:$0xff]
        %v303 = vld [vmem:[%s241 + $0x198] sm:$0xff]
        %v304 = vld [vmem:[%s241 + $0x1a0] sm:$0xff]
        %v305 = vld [vmem:[%s241 + $0x1a8] sm:$0xff]
        %v306 = vld [vmem:[%s241 + $0x1b0] sm:$0xff]
        %v307 = vld [vmem:[%s241 + $0x1b8] sm:$0xff]
        %v308 = vld [vmem:[%s241 + $0x1c0] sm:$0xff]
        %v309 = vld [vmem:[%s241 + $0x1c8] sm:$0xff]
        %v310 = vld [vmem:[%s241 + $0x1d0] sm:$0xff]
        %v311 = vld [vmem:[%s241 + $0x1d8] sm:$0xff]
        %v312 = vld [vmem:[%s241 + $0x1e0] sm:$0xff]
        %v313 = vld [vmem:[%s241 + $0x1e8] sm:$0xff]
        %v314 = vld [vmem:[%s241 + $0x1f0] sm:$0xff]
        %v315 = vld [vmem:[%s241 + $0x1f8] sm:$0xff]
        %v316 = vld [vmem:[%s241 + $0x200] sm:$0xff]
        %v317 = vld [vmem:[%s241 + $0x208] sm:$0xff]
        %v318 = vld [vmem:[%s241 + $0x210] sm:$0xff]
        %v319 = vld [vmem:[%s241 + $0x218] sm:$0xff]
        %v320 = vld [vmem:[%s241 + $0x220] sm:$0xff]
        %v321 = vld [vmem:[%s241 + $0x228] sm:$0xff]
        %v322 = vld [vmem:[%s241 + $0x230] sm:$0xff]
        %v323 = vld [vmem:[%s241 + $0x238] sm:$0xff]
        %v324 = vld [vmem:[%s241 + $0x240] sm:$0xff]
        %v325 = vld [vmem:[%s241 + $0x248] sm:$0xff]
        %v326 = vld [vmem:[%s241 + $0x250] sm:$0xff]
        %v327 = vld [vmem:[%s241 + $0x258] sm:$0xff]
        %v328 = vld [vmem:[%s241 + $0x260] sm:$0xff]
        %v329 = vld [vmem:[%s241 + $0x268] sm:$0xff]
        %v330 = vld [vmem:[%s241 + $0x270] sm:$0xff]
        %v331 = vld [vmem:[%s241 + $0x278] sm:$0xff]
        %v332 = vld [vmem:[%s241 + $0x280] sm:$0xff]
        %v333 = vld [vmem:[%s241 + $0x288] sm:$0xff]
        %v334 = vld [vmem:[%s241 + $0x290] sm:$0xff]
        %v335 = vld [vmem:[%s241 + $0x298] sm:$0xff]
        %v336 = vld [vmem:[%s241 + $0x2a0] sm:$0xff]
        %v337 = vld [vmem:[%s241 + $0x2a8] sm:$0xff]
        %v338 = vld [vmem:[%s241 + $0x2b0] sm:$0xff]
        %v339 = vld [vmem:[%s241 + $0x2b8] sm:$0xff]
        %v340 = vld [vmem:[%s241 + $0x2c0] sm:$0xff]
        %v341 = vld [vmem:[%s241 + $0x2c8] sm:$0xff]
        %v342 = vld [vmem:[%s241 + $0x2d0] sm:$0xff]
        %v343 = vld [vmem:[%s241 + $0x2d8] sm:$0xff]
        %v344 = vld [vmem:[%s241 + $0x2e0] sm:$0xff]
        %v345 = vld [vmem:[%s241 + $0x2e8] sm:$0xff]
        %v346 = vld [vmem:[%s241 + $0x2f0] sm:$0xff]
        %v347 = vld [vmem:[%s241 + $0x2f8] sm:$0xff]
        %v348 = vld [vmem:[%s5] sm:$0x1]
        %v349 = vld [vmem:[%s5 + $0x1] sm:$0xf]
        %v350 = vld [vmem:[%s5 + $0x5] sm:$0x1]
        %v351 = vld [vmem:[%s1] sm:$0xff]
        %v352 = vld [vmem:[%s1 + $0x8] sm:$0xff]
        %v353 = vld [vmem:[%s1 + $0x10] sm:$0xff]
        %v354 = vld [vmem:[%s1 + $0x18] sm:$0xff]
        %v355 = vld [vmem:[%s1 + $0x20] sm:$0xff]
        %v356 = vld [vmem:[%s1 + $0x28] sm:$0xff]
        %v357 = vld [vmem:[%s1 + $0x30] sm:$0xff]
        %v358 = vld [vmem:[%s1 + $0x38] sm:$0xff]
        %v359 = vld [vmem:[%s1 + $0x40] sm:$0xff]
        %v360 = vld [vmem:[%s1 + $0x48] sm:$0xff]
        %v361 = vld [vmem:[%s1 + $0x50] sm:$0xff]
        %v362 = vld [vmem:[%s1 + $0x58] sm:$0xff]
        %v363 = vld [vmem:[%s1 + $0x60] sm:$0xff]
        %v364 = vld [vmem:[%s1 + $0x68] sm:$0xff]
        %v365 = vld [vmem:[%s1 + $0x70] sm:$0xff]
        %v366 = vld [vmem:[%s1 + $0x78] sm:$0xff]
        %v367 = vld [vmem:[%s1 + $0x80] sm:$0xff]
        %v368 = vld [vmem:[%s1 + $0x88] sm:$0xff]
        %v369 = vld [vmem:[%s1 + $0x90] sm:$0xff]
        %v370 = vld [vmem:[%s1 + $0x98] sm:$0xff]
        %v371 = vld [vmem:[%s1 + $0xa0] sm:$0xff]
        %v372 = vld [vmem:[%s1 + $0xa8] sm:$0xff]
        %v373 = vld [vmem:[%s1 + $0xb0] sm:$0xff]
        %v374 = vld [vmem:[%s1 + $0xb8] sm:$0xff]
        %v375 = vld [vmem:[%s1 + $0xc0] sm:$0xff]
        %v376 = vld [vmem:[%s1 + $0xc8] sm:$0xff]
        %v377 = vld [vmem:[%s1 + $0xd0] sm:$0xff]
        %v378 = vld [vmem:[%s1 + $0xd8] sm:$0xff]
        %v379 = vld [vmem:[%s1 + $0xe0] sm:$0xff]
        %v380 = vld [vmem:[%s1 + $0xe8] sm:$0xff]
        %v381 = vld [vmem:[%s1 + $0xf0] sm:$0xff]
        %v382 = vld [vmem:[%s1 + $0xf8] sm:$0xff]
        %v383 = vld [vmem:[%s1 + $0x100] sm:$0xff]
        %v384 = vld [vmem:[%s1 + $0x108] sm:$0xff]
        %v385 = vld [vmem:[%s1 + $0x110] sm:$0xff]
        %v386 = vld [vmem:[%s1 + $0x118] sm:$0xff]
        %v387 = vld [vmem:[%s1 + $0x120] sm:$0xff]
        %v388 = vld [vmem:[%s1 + $0x128] sm:$0xff]
        %v389 = vld [vmem:[%s1 + $0x130] sm:$0xff]
        %v390 = vld [vmem:[%s1 + $0x138] sm:$0xff]
        %v391 = vld [vmem:[%s1 + $0x140] sm:$0xff]
        %v392 = vld [vmem:[%s1 + $0x148] sm:$0xff]
        %v393 = vld [vmem:[%s1 + $0x150] sm:$0xff]
        %v394 = vld [vmem:[%s1 + $0x158] sm:$0xff]
        %v395 = vld [vmem:[%s1 + $0x160] sm:$0xff]
        %v396 = vld [vmem:[%s1 + $0x168] sm:$0xff]
        %v397 = vld [vmem:[%s1 + $0x170] sm:$0xff]
        %v398 = vld [vmem:[%s1 + $0x178] sm:$0xff]
        %v399 = vld [vmem:[%s1 + $0x180] sm:$0xff]
        %v400 = vld [vmem:[%s1 + $0x188] sm:$0xff]
        %v401 = vld [vmem:[%s1 + $0x190] sm:$0xff]
        %v402 = vld [vmem:[%s1 + $0x198] sm:$0xff]
        %v403 = vld [vmem:[%s1 + $0x1a0] sm:$0xff]
        %v404 = vld [vmem:[%s1 + $0x1a8] sm:$0xff]
        %v405 = vld [vmem:[%s1 + $0x1b0] sm:$0xff]
        %v406 = vld [vmem:[%s1 + $0x1b8] sm:$0xff]
        %v407 = vld [vmem:[%s1 + $0x1c0] sm:$0xff]
        %v408 = vld [vmem:[%s1 + $0x1c8] sm:$0xff]
        %v409 = vld [vmem:[%s1 + $0x1d0] sm:$0xff]
        %v410 = vld [vmem:[%s1 + $0x1d8] sm:$0xff]
        %v411 = vld [vmem:[%s1 + $0x1e0] sm:$0xff]
        %v412 = vld [vmem:[%s1 + $0x1e8] sm:$0xff]
        %v413 = vld [vmem:[%s1 + $0x1f0] sm:$0xff]
        %v414 = vld [vmem:[%s1 + $0x1f8] sm:$0xff]
        %v415 = vld [vmem:[%s1 + $0x200] sm:$0xff]
        %v416 = vld [vmem:[%s1 + $0x208] sm:$0xff]
        %v417 = vld [vmem:[%s1 + $0x210] sm:$0xff]
        %v418 = vld [vmem:[%s1 + $0x218] sm:$0xff]
        %v419 = vld [vmem:[%s1 + $0x220] sm:$0xff]
        %v420 = vld [vmem:[%s1 + $0x228] sm:$0xff]
        %v421 = vld [vmem:[%s1 + $0x230] sm:$0xff]
        %v422 = vld [vmem:[%s1 + $0x238] sm:$0xff]
        %v423 = vld [vmem:[%s1 + $0x240] sm:$0xff]
        %v424 = vld [vmem:[%s1 + $0x248] sm:$0xff]
        %v425 = vld [vmem:[%s1 + $0x250] sm:$0xff]
        %v426 = vld [vmem:[%s1 + $0x258] sm:$0xff]
        %v427 = vld [vmem:[%s1 + $0x260] sm:$0xff]
        %v428 = vld [vmem:[%s1 + $0x268] sm:$0xff]
        %v429 = vld [vmem:[%s1 + $0x270] sm:$0xff]
        %v430 = vld [vmem:[%s1 + $0x278] sm:$0xff]
        %v431 = vld [vmem:[%s1 + $0x280] sm:$0xff]
        %v432 = vld [vmem:[%s1 + $0x288] sm:$0xff]
        %v433 = vld [vmem:[%s1 + $0x290] sm:$0xff]
        %v434 = vld [vmem:[%s1 + $0x298] sm:$0xff]
        %v435 = vld [vmem:[%s1 + $0x2a0] sm:$0xff]
        %v436 = vld [vmem:[%s1 + $0x2a8] sm:$0xff]
        %v437 = vld [vmem:[%s1 + $0x2b0] sm:$0xff]
        %v438 = vld [vmem:[%s1 + $0x2b8] sm:$0xff]
        %v439 = vld [vmem:[%s1 + $0x2c0] sm:$0xff]
        %v440 = vld [vmem:[%s1 + $0x2c8] sm:$0xff]
        %v441 = vld [vmem:[%s1 + $0x2d0] sm:$0xff]
        %v442 = vld [vmem:[%s1 + $0x2d8] sm:$0xff]
        %v443 = vld [vmem:[%s1 + $0x2e0] sm:$0xff]
        %v444 = vld [vmem:[%s1 + $0x2e8] sm:$0xff]
        %v445 = vld [vmem:[%s1 + $0x2f0] sm:$0xff]
        %v446 = vld [vmem:[%s1 + $0x2f8] sm:$0xff]
        %v448 = vperm.slane %v348, 0
        %450 = vmatpush.msra.mxu0 %v366
        %451 = vmatpush.msra.mxu0 %v365
        %452 = vmatpush.msra.mxu0 %v364
        %453 = vmatpush.msra.mxu0 %v363
        %454 = vmatpush.msra.mxu0 %v362
        %455 = vmatpush.msra.mxu0 %v361
        %456 = vmatpush.msra.mxu0 %v360
        %457 = vmatpush.msra.mxu0 %v359
        %458 = vmatpush.msra.mxu0 %v358
        %459 = vmatpush.msra.mxu0 %v357
        %460 = vmatpush.msra.mxu0 %v356
        %461 = vmatpush.msra.mxu0 %v355
        %462 = vmatpush.msra.mxu0 %v354
        %463 = vmatpush.msra.mxu0 %v353
        %464 = vmatpush.msra.mxu0 %v352
        %465 = vmatpush.msra.mxu0 %v351
        %466 = vmatmul.f32.gmra.mxu0 %v252
        %v467 = vpop.f32.mrf.mxu0
        %v468 = vadd.f32 %v448, %v467
        %469 = vmatmul.f32.gmra.mxu0 %v258
        %v470 = vpop.f32.mrf.mxu0
        %v471 = vadd.f32 %v448, %v470
        %472 = vmatmul.f32.gmra.mxu0 %v264
        %v473 = vpop.f32.mrf.mxu0
        %v474 = vadd.f32 %v448, %v473
        %475 = vmatmul.f32.gmra.mxu0 %v270
        %v476 = vpop.f32.mrf.mxu0
        %v477 = vadd.f32 %v448, %v476
        %478 = vmatmul.f32.gmra.mxu0 %v276
        %v479 = vpop.f32.mrf.mxu0
        %v480 = vadd.f32 %v448, %v479
        %481 = vmatmul.f32.gmra.mxu0 %v282
        %v482 = vpop.f32.mrf.mxu0
        %v483 = vadd.f32 %v448, %v482
        %484 = vmatmul.f32.gmra.mxu0 %v288
        %v485 = vpop.f32.mrf.mxu0
        %v486 = vadd.f32 %v448, %v485
        %487 = vmatmul.f32.gmra.mxu0 %v294
        %v488 = vpop.f32.mrf.mxu0
        %v489 = vadd.f32 %v448, %v488
        %490 = vmatmul.f32.gmra.mxu0 %v300
        %v491 = vpop.f32.mrf.mxu0
        %v492 = vadd.f32 %v448, %v491
        %493 = vmatmul.f32.gmra.mxu0 %v306
        %v494 = vpop.f32.mrf.mxu0
        %v495 = vadd.f32 %v448, %v494
        %496 = vmatmul.f32.gmra.mxu0 %v312
        %v497 = vpop.f32.mrf.mxu0
        %v498 = vadd.f32 %v448, %v497
        %499 = vmatmul.f32.gmra.mxu0 %v318
        %v500 = vpop.f32.mrf.mxu0
        %v501 = vadd.f32 %v448, %v500
        %502 = vmatmul.f32.gmra.mxu0 %v324
        %v503 = vpop.f32.mrf.mxu0
        %v504 = vadd.f32 %v448, %v503
        %505 = vmatmul.f32.gmra.mxu0 %v330
        %v506 = vpop.f32.mrf.mxu0
        %v507 = vadd.f32 %v448, %v506
        %508 = vmatmul.f32.gmra.mxu0 %v336
        %v509 = vpop.f32.mrf.mxu0
        %v510 = vadd.f32 %v448, %v509
        %511 = vmatmul.f32.gmra.mxu0 %v342
        %v512 = vpop.f32.mrf.mxu0
        %v513 = vadd.f32 %v448, %v512
        %514 = vdwg.mxu0
        %515 = vmatpush.msra.mxu0 %v382
        %516 = vmatpush.msra.mxu0 %v381
        %517 = vmatpush.msra.mxu0 %v380
        %518 = vmatpush.msra.mxu0 %v379
        %519 = vmatpush.msra.mxu0 %v378
        %520 = vmatpush.msra.mxu0 %v377
        %521 = vmatpush.msra.mxu0 %v376
        %522 = vmatpush.msra.mxu0 %v375
        %523 = vmatpush.msra.mxu0 %v374
        %524 = vmatpush.msra.mxu0 %v373
        %525 = vmatpush.msra.mxu0 %v372
        %526 = vmatpush.msra.mxu0 %v371
        %527 = vmatpush.msra.mxu0 %v370
        %528 = vmatpush.msra.mxu0 %v369
        %529 = vmatpush.msra.mxu0 %v368
        %530 = vmatpush.msra.mxu0 %v367
        %531 = vmatmul.f32.gmra.mxu0 %v253
        %v532 = vpop.f32.mrf.mxu0
        %v533 = vadd.f32 %v468, %v532
        %534 = vmatmul.f32.gmra.mxu0 %v259
        %v535 = vpop.f32.mrf.mxu0
        %v536 = vadd.f32 %v471, %v535
        %537 = vmatmul.f32.gmra.mxu0 %v265
        %v538 = vpop.f32.mrf.mxu0
        %v539 = vadd.f32 %v474, %v538
        %540 = vmatmul.f32.gmra.mxu0 %v271
        %v541 = vpop.f32.mrf.mxu0
        %v542 = vadd.f32 %v477, %v541
        %543 = vmatmul.f32.gmra.mxu0 %v277
        %v544 = vpop.f32.mrf.mxu0
        %v545 = vadd.f32 %v480, %v544
        %546 = vmatmul.f32.gmra.mxu0 %v283
        %v547 = vpop.f32.mrf.mxu0
        %v548 = vadd.f32 %v483, %v547
        %549 = vmatmul.f32.gmra.mxu0 %v289
        %v550 = vpop.f32.mrf.mxu0
        %v551 = vadd.f32 %v486, %v550
        %552 = vmatmul.f32.gmra.mxu0 %v295
        %v553 = vpop.f32.mrf.mxu0
        %v554 = vadd.f32 %v489, %v553
        %555 = vmatmul.f32.gmra.mxu0 %v301
        %v556 = vpop.f32.mrf.mxu0
        %v557 = vadd.f32 %v492, %v556
        %558 = vmatmul.f32.gmra.mxu0 %v307
        %v559 = vpop.f32.mrf.mxu0
        %v560 = vadd.f32 %v495, %v559
        %561 = vmatmul.f32.gmra.mxu0 %v313
        %v562 = vpop.f32.mrf.mxu0
        %v563 = vadd.f32 %v498, %v562
        %564 = vmatmul.f32.gmra.mxu0 %v319
        %v565 = vpop.f32.mrf.mxu0
        %v566 = vadd.f32 %v501, %v565
        %567 = vmatmul.f32.gmra.mxu0 %v325
        %v568 = vpop.f32.mrf.mxu0
        %v569 = vadd.f32 %v504, %v568
        %570 = vmatmul.f32.gmra.mxu0 %v331
        %v571 = vpop.f32.mrf.mxu0
        %v572 = vadd.f32 %v507, %v571
        %573 = vmatmul.f32.gmra.mxu0 %v337
        %v574 = vpop.f32.mrf.mxu0
        %v575 = vadd.f32 %v510, %v574
        %576 = vmatmul.f32.gmra.mxu0 %v343
        %v577 = vpop.f32.mrf.mxu0
        %v578 = vadd.f32 %v513, %v577
        %579 = vdwg.mxu0
        %580 = vmatpush.msra.mxu0 %v398
        %581 = vmatpush.msra.mxu0 %v397
        %582 = vmatpush.msra.mxu0 %v396
        %583 = vmatpush.msra.mxu0 %v395
        %584 = vmatpush.msra.mxu0 %v394
        %585 = vmatpush.msra.mxu0 %v393
        %586 = vmatpush.msra.mxu0 %v392
        %587 = vmatpush.msra.mxu0 %v391
        %588 = vmatpush.msra.mxu0 %v390
        %589 = vmatpush.msra.mxu0 %v389
        %590 = vmatpush.msra.mxu0 %v388
        %591 = vmatpush.msra.mxu0 %v387
        %592 = vmatpush.msra.mxu0 %v386
        %593 = vmatpush.msra.mxu0 %v385
        %594 = vmatpush.msra.mxu0 %v384
        %595 = vmatpush.msra.mxu0 %v383
        %596 = vmatmul.f32.gmra.mxu0 %v254
        %v597 = vpop.f32.mrf.mxu0
        %v598 = vadd.f32 %v533, %v597
        %599 = vmatmul.f32.gmra.mxu0 %v260
        %v600 = vpop.f32.mrf.mxu0
        %v601 = vadd.f32 %v536, %v600
        %602 = vmatmul.f32.gmra.mxu0 %v266
        %v603 = vpop.f32.mrf.mxu0
        %v604 = vadd.f32 %v539, %v603
        %605 = vmatmul.f32.gmra.mxu0 %v272
        %v606 = vpop.f32.mrf.mxu0
        %v607 = vadd.f32 %v542, %v606
        %608 = vmatmul.f32.gmra.mxu0 %v278
        %v609 = vpop.f32.mrf.mxu0
        %v610 = vadd.f32 %v545, %v609
        %611 = vmatmul.f32.gmra.mxu0 %v284
        %v612 = vpop.f32.mrf.mxu0
        %v613 = vadd.f32 %v548, %v612
        %614 = vmatmul.f32.gmra.mxu0 %v290
        %v615 = vpop.f32.mrf.mxu0
        %v616 = vadd.f32 %v551, %v615
        %617 = vmatmul.f32.gmra.mxu0 %v296
        %v618 = vpop.f32.mrf.mxu0
        %v619 = vadd.f32 %v554, %v618
        %620 = vmatmul.f32.gmra.mxu0 %v302
        %v621 = vpop.f32.mrf.mxu0
        %v622 = vadd.f32 %v557, %v621
        %623 = vmatmul.f32.gmra.mxu0 %v308
        %v624 = vpop.f32.mrf.mxu0
        %v625 = vadd.f32 %v560, %v624
        %626 = vmatmul.f32.gmra.mxu0 %v314
        %v627 = vpop.f32.mrf.mxu0
        %v628 = vadd.f32 %v563, %v627
        %629 = vmatmul.f32.gmra.mxu0 %v320
        %v630 = vpop.f32.mrf.mxu0
        %v631 = vadd.f32 %v566, %v630
        %632 = vmatmul.f32.gmra.mxu0 %v326
        %v633 = vpop.f32.mrf.mxu0
        %v634 = vadd.f32 %v569, %v633
        %635 = vmatmul.f32.gmra.mxu0 %v332
        %v636 = vpop.f32.mrf.mxu0
        %v637 = vadd.f32 %v572, %v636
        %638 = vmatmul.f32.gmra.mxu0 %v338
        %v639 = vpop.f32.mrf.mxu0
        %v640 = vadd.f32 %v575, %v639
        %641 = vmatmul.f32.gmra.mxu0 %v344
        %v642 = vpop.f32.mrf.mxu0
        %v643 = vadd.f32 %v578, %v642
        %644 = vdwg.mxu0
        %645 = vmatpush.msra.mxu0 %v414
        %646 = vmatpush.msra.mxu0 %v413
        %647 = vmatpush.msra.mxu0 %v412
        %648 = vmatpush.msra.mxu0 %v411
        %649 = vmatpush.msra.mxu0 %v410
        %650 = vmatpush.msra.mxu0 %v409
        %651 = vmatpush.msra.mxu0 %v408
        %652 = vmatpush.msra.mxu0 %v407
        %653 = vmatpush.msra.mxu0 %v406
        %654 = vmatpush.msra.mxu0 %v405
        %655 = vmatpush.msra.mxu0 %v404
        %656 = vmatpush.msra.mxu0 %v403
        %657 = vmatpush.msra.mxu0 %v402
        %658 = vmatpush.msra.mxu0 %v401
        %659 = vmatpush.msra.mxu0 %v400
        %660 = vmatpush.msra.mxu0 %v399
        %661 = vmatmul.f32.gmra.mxu0 %v255
        %v662 = vpop.f32.mrf.mxu0
        %v663 = vadd.f32 %v598, %v662
        %664 = vmatmul.f32.gmra.mxu0 %v261
        %v665 = vpop.f32.mrf.mxu0
        %v666 = vadd.f32 %v601, %v665
        %667 = vmatmul.f32.gmra.mxu0 %v267
        %v668 = vpop.f32.mrf.mxu0
        %v669 = vadd.f32 %v604, %v668
        %670 = vmatmul.f32.gmra.mxu0 %v273
        %v671 = vpop.f32.mrf.mxu0
        %v672 = vadd.f32 %v607, %v671
        %673 = vmatmul.f32.gmra.mxu0 %v279
        %v674 = vpop.f32.mrf.mxu0
        %v675 = vadd.f32 %v610, %v674
        %676 = vmatmul.f32.gmra.mxu0 %v285
        %v677 = vpop.f32.mrf.mxu0
        %v678 = vadd.f32 %v613, %v677
        %679 = vmatmul.f32.gmra.mxu0 %v291
        %v680 = vpop.f32.mrf.mxu0
        %v681 = vadd.f32 %v616, %v680
        %682 = vmatmul.f32.gmra.mxu0 %v297
        %v683 = vpop.f32.mrf.mxu0
        %v684 = vadd.f32 %v619, %v683
        %685 = vmatmul.f32.gmra.mxu0 %v303
        %v686 = vpop.f32.mrf.mxu0
        %v687 = vadd.f32 %v622, %v686
        %688 = vmatmul.f32.gmra.mxu0 %v309
        %v689 = vpop.f32.mrf.mxu0
        %v690 = vadd.f32 %v625, %v689
        %691 = vmatmul.f32.gmra.mxu0 %v315
        %v692 = vpop.f32.mrf.mxu0
        %v693 = vadd.f32 %v628, %v692
        %694 = vmatmul.f32.gmra.mxu0 %v321
        %v695 = vpop.f32.mrf.mxu0
        %v696 = vadd.f32 %v631, %v695
        %697 = vmatmul.f32.gmra.mxu0 %v327
        %v698 = vpop.f32.mrf.mxu0
        %v699 = vadd.f32 %v634, %v698
        %700 = vmatmul.f32.gmra.mxu0 %v333
        %v701 = vpop.f32.mrf.mxu0
        %v702 = vadd.f32 %v637, %v701
        %703 = vmatmul.f32.gmra.mxu0 %v339
        %v704 = vpop.f32.mrf.mxu0
        %v705 = vadd.f32 %v640, %v704
        %706 = vmatmul.f32.gmra.mxu0 %v345
        %v707 = vpop.f32.mrf.mxu0
        %v708 = vadd.f32 %v643, %v707
        %709 = vdwg.mxu0
        %710 = vmatpush.msra.mxu0 %v430
        %711 = vmatpush.msra.mxu0 %v429
        %712 = vmatpush.msra.mxu0 %v428
        %713 = vmatpush.msra.mxu0 %v427
        %714 = vmatpush.msra.mxu0 %v426
        %715 = vmatpush.msra.mxu0 %v425
        %716 = vmatpush.msra.mxu0 %v424
        %717 = vmatpush.msra.mxu0 %v423
        %718 = vmatpush.msra.mxu0 %v422
        %719 = vmatpush.msra.mxu0 %v421
        %720 = vmatpush.msra.mxu0 %v420
        %721 = vmatpush.msra.mxu0 %v419
        %722 = vmatpush.msra.mxu0 %v418
        %723 = vmatpush.msra.mxu0 %v417
        %724 = vmatpush.msra.mxu0 %v416
        %725 = vmatpush.msra.mxu0 %v415
        %726 = vmatmul.f32.gmra.mxu0 %v256
        %v727 = vpop.f32.mrf.mxu0
        %v728 = vadd.f32 %v663, %v727
        %729 = vmatmul.f32.gmra.mxu0 %v262
        %v730 = vpop.f32.mrf.mxu0
        %v731 = vadd.f32 %v666, %v730
        %732 = vmatmul.f32.gmra.mxu0 %v268
        %v733 = vpop.f32.mrf.mxu0
        %v734 = vadd.f32 %v669, %v733
        %735 = vmatmul.f32.gmra.mxu0 %v274
        %v736 = vpop.f32.mrf.mxu0
        %v737 = vadd.f32 %v672, %v736
        %738 = vmatmul.f32.gmra.mxu0 %v280
        %v739 = vpop.f32.mrf.mxu0
        %v740 = vadd.f32 %v675, %v739
        %741 = vmatmul.f32.gmra.mxu0 %v286
        %v742 = vpop.f32.mrf.mxu0
        %v743 = vadd.f32 %v678, %v742
        %744 = vmatmul.f32.gmra.mxu0 %v292
        %v745 = vpop.f32.mrf.mxu0
        %v746 = vadd.f32 %v681, %v745
        %747 = vmatmul.f32.gmra.mxu0 %v298
        %v748 = vpop.f32.mrf.mxu0
        %v749 = vadd.f32 %v684, %v748
        %750 = vmatmul.f32.gmra.mxu0 %v304
        %v751 = vpop.f32.mrf.mxu0
        %v752 = vadd.f32 %v687, %v751
        %753 = vmatmul.f32.gmra.mxu0 %v310
        %v754 = vpop.f32.mrf.mxu0
        %v755 = vadd.f32 %v690, %v754
        %756 = vmatmul.f32.gmra.mxu0 %v316
        %v757 = vpop.f32.mrf.mxu0
        %v758 = vadd.f32 %v693, %v757
        %759 = vmatmul.f32.gmra.mxu0 %v322
        %v760 = vpop.f32.mrf.mxu0
        %v761 = vadd.f32 %v696, %v760
        %762 = vmatmul.f32.gmra.mxu0 %v328
        %v763 = vpop.f32.mrf.mxu0
        %v764 = vadd.f32 %v699, %v763
        %765 = vmatmul.f32.gmra.mxu0 %v334
        %v766 = vpop.f32.mrf.mxu0
        %v767 = vadd.f32 %v702, %v766
        %768 = vmatmul.f32.gmra.mxu0 %v340
        %v769 = vpop.f32.mrf.mxu0
        %v770 = vadd.f32 %v705, %v769
        %771 = vmatmul.f32.gmra.mxu0 %v346
        %v772 = vpop.f32.mrf.mxu0
        %v773 = vadd.f32 %v708, %v772
        %774 = vdwg.mxu0
        %775 = vmatpush.msra.mxu0 %v446
        %776 = vmatpush.msra.mxu0 %v445
        %777 = vmatpush.msra.mxu0 %v444
        %778 = vmatpush.msra.mxu0 %v443
        %779 = vmatpush.msra.mxu0 %v442
        %780 = vmatpush.msra.mxu0 %v441
        %781 = vmatpush.msra.mxu0 %v440
        %782 = vmatpush.msra.mxu0 %v439
        %783 = vmatpush.msra.mxu0 %v438
        %784 = vmatpush.msra.mxu0 %v437
        %785 = vmatpush.msra.mxu0 %v436
        %786 = vmatpush.msra.mxu0 %v435
        %787 = vmatpush.msra.mxu0 %v434
        %788 = vmatpush.msra.mxu0 %v433
        %789 = vmatpush.msra.mxu0 %v432
        %790 = vmatpush.msra.mxu0 %v431
        %791 = vmatmul.f32.gmra.mxu0 %v257
        %v792 = vpop.f32.mrf.mxu0
        %v793 = vadd.f32 %v728, %v792
        %794 = vmatmul.f32.gmra.mxu0 %v263
        %v795 = vpop.f32.mrf.mxu0
        %v796 = vadd.f32 %v731, %v795
        %797 = vmatmul.f32.gmra.mxu0 %v269
        %v798 = vpop.f32.mrf.mxu0
        %v799 = vadd.f32 %v734, %v798
        %800 = vmatmul.f32.gmra.mxu0 %v275
        %v801 = vpop.f32.mrf.mxu0
        %v802 = vadd.f32 %v737, %v801
        %803 = vmatmul.f32.gmra.mxu0 %v281
        %v804 = vpop.f32.mrf.mxu0
        %v805 = vadd.f32 %v740, %v804
        %806 = vmatmul.f32.gmra.mxu0 %v287
        %v807 = vpop.f32.mrf.mxu0
        %v808 = vadd.f32 %v743, %v807
        %809 = vmatmul.f32.gmra.mxu0 %v293
        %v810 = vpop.f32.mrf.mxu0
        %v811 = vadd.f32 %v746, %v810
        %812 = vmatmul.f32.gmra.mxu0 %v299
        %v813 = vpop.f32.mrf.mxu0
        %v814 = vadd.f32 %v749, %v813
        %815 = vmatmul.f32.gmra.mxu0 %v305
        %v816 = vpop.f32.mrf.mxu0
        %v817 = vadd.f32 %v752, %v816
        %818 = vmatmul.f32.gmra.mxu0 %v311
        %v819 = vpop.f32.mrf.mxu0
        %v820 = vadd.f32 %v755, %v819
        %821 = vmatmul.f32.gmra.mxu0 %v317
        %v822 = vpop.f32.mrf.mxu0
        %v823 = vadd.f32 %v758, %v822
        %824 = vmatmul.f32.gmra.mxu0 %v323
        %v825 = vpop.f32.mrf.mxu0
        %v826 = vadd.f32 %v761, %v825
        %827 = vmatmul.f32.gmra.mxu0 %v329
        %v828 = vpop.f32.mrf.mxu0
        %v829 = vadd.f32 %v764, %v828
        %830 = vmatmul.f32.gmra.mxu0 %v335
        %v831 = vpop.f32.mrf.mxu0
        %v832 = vadd.f32 %v767, %v831
        %833 = vmatmul.f32.gmra.mxu0 %v341
        %v834 = vpop.f32.mrf.mxu0
        %v835 = vadd.f32 %v770, %v834
        %836 = vmatmul.f32.gmra.mxu0 %v347
        %v837 = vpop.f32.mrf.mxu0
        %v838 = vadd.f32 %v773, %v837
        %839 = vdwg.mxu0
        %v840 = vld [vmem:[%s2] sm:$0xff]
        %v841 = vld [vmem:[%s2 + $0x8] sm:$0xff]
        %v842 = vld [vmem:[%s2 + $0x10] sm:$0xff]
        %v843 = vld [vmem:[%s2 + $0x18] sm:$0xff]
        %v844 = vld [vmem:[%s2 + $0x20] sm:$0xff]
        %v845 = vld [vmem:[%s2 + $0x28] sm:$0xff]
        %v846 = vld [vmem:[%s2 + $0x30] sm:$0xff]
        %v847 = vld [vmem:[%s2 + $0x38] sm:$0xff]
        %v848 = vld [vmem:[%s2 + $0x40] sm:$0xff]
        %v849 = vld [vmem:[%s2 + $0x48] sm:$0xff]
        %v850 = vld [vmem:[%s2 + $0x50] sm:$0xff]
        %v851 = vld [vmem:[%s2 + $0x58] sm:$0xff]
        %v852 = vld [vmem:[%s2 + $0x60] sm:$0xff]
        %v853 = vld [vmem:[%s2 + $0x68] sm:$0xff]
        %v854 = vld [vmem:[%s2 + $0x70] sm:$0xff]
        %v855 = vld [vmem:[%s2 + $0x78] sm:$0xff]
        %v856 = vld [vmem:[%s2 + $0x80] sm:$0xff]
        %v857 = vld [vmem:[%s2 + $0x88] sm:$0xff]
        %v858 = vld [vmem:[%s2 + $0x90] sm:$0xff]
        %v859 = vld [vmem:[%s2 + $0x98] sm:$0xff]
        %v860 = vld [vmem:[%s2 + $0xa0] sm:$0xff]
        %v861 = vld [vmem:[%s2 + $0xa8] sm:$0xff]
        %v862 = vld [vmem:[%s2 + $0xb0] sm:$0xff]
        %v863 = vld [vmem:[%s2 + $0xb8] sm:$0xff]
        %v864 = vld [vmem:[%s2 + $0xc0] sm:$0xff]
        %v865 = vld [vmem:[%s2 + $0xc8] sm:$0xff]
        %v866 = vld [vmem:[%s2 + $0xd0] sm:$0xff]
        %v867 = vld [vmem:[%s2 + $0xd8] sm:$0xff]
        %v868 = vld [vmem:[%s2 + $0xe0] sm:$0xff]
        %v869 = vld [vmem:[%s2 + $0xe8] sm:$0xff]
        %v870 = vld [vmem:[%s2 + $0xf0] sm:$0xff]
        %v871 = vld [vmem:[%s2 + $0xf8] sm:$0xff]
        %v873 = vperm.slane %v349, 0
        %v874 = vperm.slane %v349, 1
        %v875 = vperm.slane %v349, 2
        %v876 = vperm.slane %v349, 3
        %vm881 = vcmask 523264
        %v883 = vsel %vm881, %v793, 0
        %v886 = vsel %vm881, %v796, 0
        %v889 = vsel %vm881, %v799, 0
        %v892 = vsel %vm881, %v802, 0
        %v895 = vsel %vm881, %v805, 0
        %v898 = vsel %vm881, %v808, 0
        %v901 = vsel %vm881, %v811, 0
        %v904 = vsel %vm881, %v814, 0
        %v907 = vsel %vm881, %v817, 0
        %v910 = vsel %vm881, %v820, 0
        %v913 = vsel %vm881, %v823, 0
        %v916 = vsel %vm881, %v826, 0
        %v919 = vsel %vm881, %v829, 0
        %v922 = vsel %vm881, %v832, 0
        %v925 = vsel %vm881, %v835, 0
        %v928 = vsel %vm881, %v838, 0
        %930 = vmatpush.msra.mxu0 0.0
        %931 = vmatpush.msra.mxu0 0.0
        %932 = vmatpush.msra.mxu0 0.0
        %933 = vmatpush.msra.mxu0 0.0
        %934 = vmatpush.msra.mxu0 0.0
        %935 = vmatpush.msra.mxu0 0.0
        %936 = vmatpush.msra.mxu0 0.0
        %937 = vmatpush.msra.mxu0 0.0
        %938 = vmatpush.msra.mxu0 %v868
        %939 = vmatpush.msra.mxu0 %v864
        %940 = vmatpush.msra.mxu0 %v860
        %941 = vmatpush.msra.mxu0 %v856
        %942 = vmatpush.msra.mxu0 %v852
        %943 = vmatpush.msra.mxu0 %v848
        %944 = vmatpush.msra.mxu0 %v844
        %945 = vmatpush.msra.mxu0 %v840
        %946 = vmatmul.f32.gmra.mxu0 %v883
        %v947 = vpop.f32.mrf.mxu0
        %v948 = vadd.f32 %v873, %v947
        %949 = vmatmul.f32.gmra.mxu0 %v886
        %v950 = vpop.f32.mrf.mxu0
        %v951 = vadd.f32 %v873, %v950
        %952 = vmatmul.f32.gmra.mxu0 %v889
        %v953 = vpop.f32.mrf.mxu0
        %v954 = vadd.f32 %v873, %v953
        %955 = vmatmul.f32.gmra.mxu0 %v892
        %v956 = vpop.f32.mrf.mxu0
        %v957 = vadd.f32 %v873, %v956
        %958 = vmatmul.f32.gmra.mxu0 %v895
        %v959 = vpop.f32.mrf.mxu0
        %v960 = vadd.f32 %v873, %v959
        %961 = vmatmul.f32.gmra.mxu0 %v898
        %v962 = vpop.f32.mrf.mxu0
        %v963 = vadd.f32 %v873, %v962
        %964 = vmatmul.f32.gmra.mxu0 %v901
        %v965 = vpop.f32.mrf.mxu0
        %v966 = vadd.f32 %v873, %v965
        %967 = vmatmul.f32.gmra.mxu0 %v904
        %v968 = vpop.f32.mrf.mxu0
        %v969 = vadd.f32 %v873, %v968
        %970 = vmatmul.f32.gmra.mxu0 %v907
        %v971 = vpop.f32.mrf.mxu0
        %v972 = vadd.f32 %v873, %v971
        %973 = vmatmul.f32.gmra.mxu0 %v910
        %v974 = vpop.f32.mrf.mxu0
        %v975 = vadd.f32 %v873, %v974
        %976 = vmatmul.f32.gmra.mxu0 %v913
        %v977 = vpop.f32.mrf.mxu0
        %v978 = vadd.f32 %v873, %v977
        %979 = vmatmul.f32.gmra.mxu0 %v916
        %v980 = vpop.f32.mrf.mxu0
        %v981 = vadd.f32 %v873, %v980
        %982 = vmatmul.f32.gmra.mxu0 %v919
        %v983 = vpop.f32.mrf.mxu0
        %v984 = vadd.f32 %v873, %v983
        %985 = vmatmul.f32.gmra.mxu0 %v922
        %v986 = vpop.f32.mrf.mxu0
        %v987 = vadd.f32 %v873, %v986
        %988 = vmatmul.f32.gmra.mxu0 %v925
        %v989 = vpop.f32.mrf.mxu0
        %v990 = vadd.f32 %v873, %v989
        %991 = vmatmul.f32.gmra.mxu0 %v928
        %v992 = vpop.f32.mrf.mxu0
        %v993 = vadd.f32 %v873, %v992
        %994 = vdwg.mxu0
        %995 = vmatpush.msra.mxu0 0.0
        %996 = vmatpush.msra.mxu0 0.0
        %997 = vmatpush.msra.mxu0 0.0
        %998 = vmatpush.msra.mxu0 0.0
        %999 = vmatpush.msra.mxu0 0.0
        %1000 = vmatpush.msra.mxu0 0.0
        %1001 = vmatpush.msra.mxu0 0.0
        %1002 = vmatpush.msra.mxu0 0.0
        %1003 = vmatpush.msra.mxu0 %v869
        %1004 = vmatpush.msra.mxu0 %v865
        %1005 = vmatpush.msra.mxu0 %v861
        %1006 = vmatpush.msra.mxu0 %v857
        %1007 = vmatpush.msra.mxu0 %v853
        %1008 = vmatpush.msra.mxu0 %v849
        %1009 = vmatpush.msra.mxu0 %v845
        %1010 = vmatpush.msra.mxu0 %v841
        %1011 = vmatmul.f32.gmra.mxu0 %v883
        %v1012 = vpop.f32.mrf.mxu0
        %v1013 = vadd.f32 %v874, %v1012
        %1014 = vmatmul.f32.gmra.mxu0 %v886
        %v1015 = vpop.f32.mrf.mxu0
        %v1016 = vadd.f32 %v874, %v1015
        %1017 = vmatmul.f32.gmra.mxu0 %v889
        %v1018 = vpop.f32.mrf.mxu0
        %v1019 = vadd.f32 %v874, %v1018
        %1020 = vmatmul.f32.gmra.mxu0 %v892
        %v1021 = vpop.f32.mrf.mxu0
        %v1022 = vadd.f32 %v874, %v1021
        %1023 = vmatmul.f32.gmra.mxu0 %v895
        %v1024 = vpop.f32.mrf.mxu0
        %v1025 = vadd.f32 %v874, %v1024
        %1026 = vmatmul.f32.gmra.mxu0 %v898
        %v1027 = vpop.f32.mrf.mxu0
        %v1028 = vadd.f32 %v874, %v1027
        %1029 = vmatmul.f32.gmra.mxu0 %v901
        %v1030 = vpop.f32.mrf.mxu0
        %v1031 = vadd.f32 %v874, %v1030
        %1032 = vmatmul.f32.gmra.mxu0 %v904
        %v1033 = vpop.f32.mrf.mxu0
        %v1034 = vadd.f32 %v874, %v1033
        %1035 = vmatmul.f32.gmra.mxu0 %v907
        %v1036 = vpop.f32.mrf.mxu0
        %v1037 = vadd.f32 %v874, %v1036
        %1038 = vmatmul.f32.gmra.mxu0 %v910
        %v1039 = vpop.f32.mrf.mxu0
        %v1040 = vadd.f32 %v874, %v1039
        %1041 = vmatmul.f32.gmra.mxu0 %v913
        %v1042 = vpop.f32.mrf.mxu0
        %v1043 = vadd.f32 %v874, %v1042
        %1044 = vmatmul.f32.gmra.mxu0 %v916
        %v1045 = vpop.f32.mrf.mxu0
        %v1046 = vadd.f32 %v874, %v1045
        %1047 = vmatmul.f32.gmra.mxu0 %v919
        %v1048 = vpop.f32.mrf.mxu0
        %v1049 = vadd.f32 %v874, %v1048
        %1050 = vmatmul.f32.gmra.mxu0 %v922
        %v1051 = vpop.f32.mrf.mxu0
        %v1052 = vadd.f32 %v874, %v1051
        %1053 = vmatmul.f32.gmra.mxu0 %v925
        %v1054 = vpop.f32.mrf.mxu0
        %v1055 = vadd.f32 %v874, %v1054
        %1056 = vmatmul.f32.gmra.mxu0 %v928
        %v1057 = vpop.f32.mrf.mxu0
        %v1058 = vadd.f32 %v874, %v1057
        %1059 = vdwg.mxu0
        %1060 = vmatpush.msra.mxu0 0.0
        %1061 = vmatpush.msra.mxu0 0.0
        %1062 = vmatpush.msra.mxu0 0.0
        %1063 = vmatpush.msra.mxu0 0.0
        %1064 = vmatpush.msra.mxu0 0.0
        %1065 = vmatpush.msra.mxu0 0.0
        %1066 = vmatpush.msra.mxu0 0.0
        %1067 = vmatpush.msra.mxu0 0.0
        %1068 = vmatpush.msra.mxu0 %v870
        %1069 = vmatpush.msra.mxu0 %v866
        %1070 = vmatpush.msra.mxu0 %v862
        %1071 = vmatpush.msra.mxu0 %v858
        %1072 = vmatpush.msra.mxu0 %v854
        %1073 = vmatpush.msra.mxu0 %v850
        %1074 = vmatpush.msra.mxu0 %v846
        %1075 = vmatpush.msra.mxu0 %v842
        %1076 = vmatmul.f32.gmra.mxu0 %v883
        %v1077 = vpop.f32.mrf.mxu0
        %v1078 = vadd.f32 %v875, %v1077
        %1079 = vmatmul.f32.gmra.mxu0 %v886
        %v1080 = vpop.f32.mrf.mxu0
        %v1081 = vadd.f32 %v875, %v1080
        %1082 = vmatmul.f32.gmra.mxu0 %v889
        %v1083 = vpop.f32.mrf.mxu0
        %v1084 = vadd.f32 %v875, %v1083
        %1085 = vmatmul.f32.gmra.mxu0 %v892
        %v1086 = vpop.f32.mrf.mxu0
        %v1087 = vadd.f32 %v875, %v1086
        %1088 = vmatmul.f32.gmra.mxu0 %v895
        %v1089 = vpop.f32.mrf.mxu0
        %v1090 = vadd.f32 %v875, %v1089
        %1091 = vmatmul.f32.gmra.mxu0 %v898
        %v1092 = vpop.f32.mrf.mxu0
        %v1093 = vadd.f32 %v875, %v1092
        %1094 = vmatmul.f32.gmra.mxu0 %v901
        %v1095 = vpop.f32.mrf.mxu0
        %v1096 = vadd.f32 %v875, %v1095
        %1097 = vmatmul.f32.gmra.mxu0 %v904
        %v1098 = vpop.f32.mrf.mxu0
        %v1099 = vadd.f32 %v875, %v1098
        %1100 = vmatmul.f32.gmra.mxu0 %v907
        %v1101 = vpop.f32.mrf.mxu0
        %v1102 = vadd.f32 %v875, %v1101
        %1103 = vmatmul.f32.gmra.mxu0 %v910
        %v1104 = vpop.f32.mrf.mxu0
        %v1105 = vadd.f32 %v875, %v1104
        %1106 = vmatmul.f32.gmra.mxu0 %v913
        %v1107 = vpop.f32.mrf.mxu0
        %v1108 = vadd.f32 %v875, %v1107
        %1109 = vmatmul.f32.gmra.mxu0 %v916
        %v1110 = vpop.f32.mrf.mxu0
        %v1111 = vadd.f32 %v875, %v1110
        %1112 = vmatmul.f32.gmra.mxu0 %v919
        %v1113 = vpop.f32.mrf.mxu0
        %v1114 = vadd.f32 %v875, %v1113
        %1115 = vmatmul.f32.gmra.mxu0 %v922
        %v1116 = vpop.f32.mrf.mxu0
        %v1117 = vadd.f32 %v875, %v1116
        %1118 = vmatmul.f32.gmra.mxu0 %v925
        %v1119 = vpop.f32.mrf.mxu0
        %v1120 = vadd.f32 %v875, %v1119
        %1121 = vmatmul.f32.gmra.mxu0 %v928
        %v1122 = vpop.f32.mrf.mxu0
        %v1123 = vadd.f32 %v875, %v1122
        %1124 = vdwg.mxu0
        %1125 = vmatpush.msra.mxu0 0.0
        %1126 = vmatpush.msra.mxu0 0.0
        %1127 = vmatpush.msra.mxu0 0.0
        %1128 = vmatpush.msra.mxu0 0.0
        %1129 = vmatpush.msra.mxu0 0.0
        %1130 = vmatpush.msra.mxu0 0.0
        %1131 = vmatpush.msra.mxu0 0.0
        %1132 = vmatpush.msra.mxu0 0.0
        %1133 = vmatpush.msra.mxu0 %v871
        %1134 = vmatpush.msra.mxu0 %v867
        %1135 = vmatpush.msra.mxu0 %v863
        %1136 = vmatpush.msra.mxu0 %v859
        %1137 = vmatpush.msra.mxu0 %v855
        %1138 = vmatpush.msra.mxu0 %v851
        %1139 = vmatpush.msra.mxu0 %v847
        %1140 = vmatpush.msra.mxu0 %v843
        %1141 = vmatmul.f32.gmra.mxu0 %v883
        %v1142 = vpop.f32.mrf.mxu0
        %v1143 = vadd.f32 %v876, %v1142
        %1144 = vmatmul.f32.gmra.mxu0 %v886
        %v1145 = vpop.f32.mrf.mxu0
        %v1146 = vadd.f32 %v876, %v1145
        %1147 = vmatmul.f32.gmra.mxu0 %v889
        %v1148 = vpop.f32.mrf.mxu0
        %v1149 = vadd.f32 %v876, %v1148
        %1150 = vmatmul.f32.gmra.mxu0 %v892
        %v1151 = vpop.f32.mrf.mxu0
        %v1152 = vadd.f32 %v876, %v1151
        %1153 = vmatmul.f32.gmra.mxu0 %v895
        %v1154 = vpop.f32.mrf.mxu0
        %v1155 = vadd.f32 %v876, %v1154
        %1156 = vmatmul.f32.gmra.mxu0 %v898
        %v1157 = vpop.f32.mrf.mxu0
        %v1158 = vadd.f32 %v876, %v1157
        %1159 = vmatmul.f32.gmra.mxu0 %v901
        %v1160 = vpop.f32.mrf.mxu0
        %v1161 = vadd.f32 %v876, %v1160
        %1162 = vmatmul.f32.gmra.mxu0 %v904
        %v1163 = vpop.f32.mrf.mxu0
        %v1164 = vadd.f32 %v876, %v1163
        %1165 = vmatmul.f32.gmra.mxu0 %v907
        %v1166 = vpop.f32.mrf.mxu0
        %v1167 = vadd.f32 %v876, %v1166
        %1168 = vmatmul.f32.gmra.mxu0 %v910
        %v1169 = vpop.f32.mrf.mxu0
        %v1170 = vadd.f32 %v876, %v1169
        %1171 = vmatmul.f32.gmra.mxu0 %v913
        %v1172 = vpop.f32.mrf.mxu0
        %v1173 = vadd.f32 %v876, %v1172
        %1174 = vmatmul.f32.gmra.mxu0 %v916
        %v1175 = vpop.f32.mrf.mxu0
        %v1176 = vadd.f32 %v876, %v1175
        %1177 = vmatmul.f32.gmra.mxu0 %v919
        %v1178 = vpop.f32.mrf.mxu0
        %v1179 = vadd.f32 %v876, %v1178
        %1180 = vmatmul.f32.gmra.mxu0 %v922
        %v1181 = vpop.f32.mrf.mxu0
        %v1182 = vadd.f32 %v876, %v1181
        %1183 = vmatmul.f32.gmra.mxu0 %v925
        %v1184 = vpop.f32.mrf.mxu0
        %v1185 = vadd.f32 %v876, %v1184
        %1186 = vmatmul.f32.gmra.mxu0 %v928
        %v1187 = vpop.f32.mrf.mxu0
        %v1188 = vadd.f32 %v876, %v1187
        %1189 = vdwg.mxu0
        %v1190 = vtanh.pop %v948
        %v1191 = vtanh.pop %v1013
        %v1192 = vtanh.pop %v951
        %v1193 = vtanh.pop %v1016
        %v1194 = vtanh.pop %v954
        %v1195 = vtanh.pop %v1019
        %v1196 = vtanh.pop %v957
        %v1197 = vtanh.pop %v1022
        %v1198 = vtanh.pop %v960
        %v1199 = vtanh.pop %v1025
        %v1200 = vtanh.pop %v963
        %v1201 = vtanh.pop %v1028
        %v1202 = vtanh.pop %v966
        %v1203 = vtanh.pop %v1031
        %v1204 = vtanh.pop %v969
        %v1205 = vtanh.pop %v1034
        %v1206 = vtanh.pop %v972
        %v1207 = vtanh.pop %v1037
        %v1208 = vtanh.pop %v975
        %v1209 = vtanh.pop %v1040
        %v1210 = vtanh.pop %v978
        %v1211 = vtanh.pop %v1043
        %v1212 = vtanh.pop %v981
        %v1213 = vtanh.pop %v1046
        %v1214 = vtanh.pop %v984
        %v1215 = vtanh.pop %v1049
        %v1216 = vtanh.pop %v987
        %v1217 = vtanh.pop %v1052
        %v1218 = vtanh.pop %v990
        %v1219 = vtanh.pop %v1055
        %v1220 = vtanh.pop %v993
        %v1221 = vtanh.pop %v1058
        %v1222 = vxor.u32 %v1078, 2147483648
        %v1223 = vxor.u32 %v1143, 2147483648
        %v1224 = vxor.u32 %v1081, 2147483648
        %v1225 = vxor.u32 %v1146, 2147483648
        %v1226 = vxor.u32 %v1084, 2147483648
        %v1227 = vxor.u32 %v1149, 2147483648
        %v1228 = vxor.u32 %v1087, 2147483648
        %v1229 = vxor.u32 %v1152, 2147483648
        %v1230 = vxor.u32 %v1090, 2147483648
        %v1231 = vxor.u32 %v1155, 2147483648
        %v1232 = vxor.u32 %v1093, 2147483648
        %v1233 = vxor.u32 %v1158, 2147483648
        %v1234 = vxor.u32 %v1096, 2147483648
        %v1235 = vxor.u32 %v1161, 2147483648
        %v1236 = vxor.u32 %v1099, 2147483648
        %v1237 = vxor.u32 %v1164, 2147483648
        %v1238 = vxor.u32 %v1102, 2147483648
        %v1239 = vxor.u32 %v1167, 2147483648
        %v1240 = vxor.u32 %v1105, 2147483648
        %v1241 = vxor.u32 %v1170, 2147483648
        %v1242 = vxor.u32 %v1108, 2147483648
        %v1243 = vxor.u32 %v1173, 2147483648
        %v1244 = vxor.u32 %v1111, 2147483648
        %v1245 = vxor.u32 %v1176, 2147483648
        %v1246 = vxor.u32 %v1114, 2147483648
        %v1247 = vxor.u32 %v1179, 2147483648
        %v1248 = vxor.u32 %v1117, 2147483648
        %v1249 = vxor.u32 %v1182, 2147483648
        %v1250 = vxor.u32 %v1120, 2147483648
        %v1251 = vxor.u32 %v1185, 2147483648
        %v1252 = vxor.u32 %v1123, 2147483648
        %v1253 = vxor.u32 %v1188, 2147483648
        %v1254 = vmul.f32 %v1222, 1.442695
        %v1255 = vpow.pop %v1254
        %v1256 = vmul.f32 %v1223, 1.442695
        %v1257 = vpow.pop %v1256
        %v1258 = vmul.f32 %v1224, 1.442695
        %v1259 = vpow.pop %v1258
        %v1260 = vmul.f32 %v1225, 1.442695
        %v1261 = vpow.pop %v1260
        %v1262 = vmul.f32 %v1226, 1.442695
        %v1263 = vpow.pop %v1262
        %v1264 = vmul.f32 %v1227, 1.442695
        %v1265 = vpow.pop %v1264
        %v1266 = vmul.f32 %v1228, 1.442695
        %v1267 = vpow.pop %v1266
        %v1268 = vmul.f32 %v1229, 1.442695
        %v1269 = vpow.pop %v1268
        %v1270 = vmul.f32 %v1230, 1.442695
        %v1271 = vpow.pop %v1270
        %v1272 = vmul.f32 %v1231, 1.442695
        %v1273 = vpow.pop %v1272
        %v1274 = vmul.f32 %v1232, 1.442695
        %v1275 = vpow.pop %v1274
        %v1276 = vmul.f32 %v1233, 1.442695
        %v1277 = vpow.pop %v1276
        %v1278 = vmul.f32 %v1234, 1.442695
        %v1279 = vpow.pop %v1278
        %v1280 = vmul.f32 %v1235, 1.442695
        %v1281 = vpow.pop %v1280
        %v1282 = vmul.f32 %v1236, 1.442695
        %v1283 = vpow.pop %v1282
        %v1284 = vmul.f32 %v1237, 1.442695
        %v1285 = vpow.pop %v1284
        %v1286 = vmul.f32 %v1238, 1.442695
        %v1287 = vpow.pop %v1286
        %v1288 = vmul.f32 %v1239, 1.442695
        %v1289 = vpow.pop %v1288
        %v1290 = vmul.f32 %v1240, 1.442695
        %v1291 = vpow.pop %v1290
        %v1292 = vmul.f32 %v1241, 1.442695
        %v1293 = vpow.pop %v1292
        %v1294 = vmul.f32 %v1242, 1.442695
        %v1295 = vpow.pop %v1294
        %v1296 = vmul.f32 %v1243, 1.442695
        %v1297 = vpow.pop %v1296
        %v1298 = vmul.f32 %v1244, 1.442695
        %v1299 = vpow.pop %v1298
        %v1300 = vmul.f32 %v1245, 1.442695
        %v1301 = vpow.pop %v1300
        %v1302 = vmul.f32 %v1246, 1.442695
        %v1303 = vpow.pop %v1302
        %v1304 = vmul.f32 %v1247, 1.442695
        %v1305 = vpow.pop %v1304
        %v1306 = vmul.f32 %v1248, 1.442695
        %v1307 = vpow.pop %v1306
        %v1308 = vmul.f32 %v1249, 1.442695
        %v1309 = vpow.pop %v1308
        %v1310 = vmul.f32 %v1250, 1.442695
        %v1311 = vpow.pop %v1310
        %v1312 = vmul.f32 %v1251, 1.442695
        %v1313 = vpow.pop %v1312
        %v1314 = vmul.f32 %v1252, 1.442695
        %v1315 = vpow.pop %v1314
        %v1316 = vmul.f32 %v1253, 1.442695
        %v1317 = vpow.pop %v1316
        %v1318 = vadd.f32 %v1255, 1.0
        %v1319 = vadd.f32 %v1257, 1.0
        %v1320 = vadd.f32 %v1259, 1.0
        %v1321 = vadd.f32 %v1261, 1.0
        %v1322 = vadd.f32 %v1263, 1.0
        %v1323 = vadd.f32 %v1265, 1.0
        %v1324 = vadd.f32 %v1267, 1.0
        %v1325 = vadd.f32 %v1269, 1.0
        %v1326 = vadd.f32 %v1271, 1.0
        %v1327 = vadd.f32 %v1273, 1.0
        %v1328 = vadd.f32 %v1275, 1.0
        %v1329 = vadd.f32 %v1277, 1.0
        %v1330 = vadd.f32 %v1279, 1.0
        %v1331 = vadd.f32 %v1281, 1.0
        %v1332 = vadd.f32 %v1283, 1.0
        %v1333 = vadd.f32 %v1285, 1.0
        %v1334 = vadd.f32 %v1287, 1.0
        %v1335 = vadd.f32 %v1289, 1.0
        %v1336 = vadd.f32 %v1291, 1.0
        %v1337 = vadd.f32 %v1293, 1.0
        %v1338 = vadd.f32 %v1295, 1.0
        %v1339 = vadd.f32 %v1297, 1.0
        %v1340 = vadd.f32 %v1299, 1.0
        %v1341 = vadd.f32 %v1301, 1.0
        %v1342 = vadd.f32 %v1303, 1.0
        %v1343 = vadd.f32 %v1305, 1.0
        %v1344 = vadd.f32 %v1307, 1.0
        %v1345 = vadd.f32 %v1309, 1.0
        %v1346 = vadd.f32 %v1311, 1.0
        %v1347 = vadd.f32 %v1313, 1.0
        %v1348 = vadd.f32 %v1315, 1.0
        %v1349 = vadd.f32 %v1317, 1.0
        %v1350 = vrcp.pop %v1318
        %v1351 = vmul.f32 %v1318, %v1350
        %v1352 = vsub.f32 1.0, %v1351
        %v1353 = vmul.f32 %v1350, %v1352
        %v1354 = vadd.f32 %v1350, %v1353
        %vm1355 = vweird.f32 %v1318
        %vm1356 = vweird.f32 %v1350
        %vm1357 = vmor %vm1355, %vm1356
        %v1358 = vsel %vm1357, %v1350, %v1354
        %v1359 = vand.u32 2147483647, %v1318
        %vm1360 = vcmp.eq.f32.partialorder %v1359, 8.507059e+37
        %v1361 = vand.u32 %v1318, 2147483648
        %v1362 = vor.u32 1.1754944e-38, %v1361
        %v1363 = vsel %vm1360, %v1362, %v1358
        %v1364 = vmul.f32 1.0, %v1363
        %v1365 = vrcp.pop %v1319
        %v1366 = vmul.f32 %v1319, %v1365
        %v1367 = vsub.f32 1.0, %v1366
        %v1368 = vmul.f32 %v1365, %v1367
        %v1369 = vadd.f32 %v1365, %v1368
        %vm1370 = vweird.f32 %v1319
        %vm1371 = vweird.f32 %v1365
        %vm1372 = vmor %vm1370, %vm1371
        %v1373 = vsel %vm1372, %v1365, %v1369
        %v1374 = vand.u32 2147483647, %v1319
        %vm1375 = vcmp.eq.f32.partialorder %v1374, 8.507059e+37
        %v1376 = vand.u32 %v1319, 2147483648
        %v1377 = vor.u32 1.1754944e-38, %v1376
        %v1378 = vsel %vm1375, %v1377, %v1373
        %v1379 = vmul.f32 1.0, %v1378
        %v1380 = vrcp.pop %v1320
        %v1381 = vmul.f32 %v1320, %v1380
        %v1382 = vsub.f32 1.0, %v1381
        %v1383 = vmul.f32 %v1380, %v1382
        %v1384 = vadd.f32 %v1380, %v1383
        %vm1385 = vweird.f32 %v1320
        %vm1386 = vweird.f32 %v1380
        %vm1387 = vmor %vm1385, %vm1386
        %v1388 = vsel %vm1387, %v1380, %v1384
        %v1389 = vand.u32 2147483647, %v1320
        %vm1390 = vcmp.eq.f32.partialorder %v1389, 8.507059e+37
        %v1391 = vand.u32 %v1320, 2147483648
        %v1392 = vor.u32 1.1754944e-38, %v1391
        %v1393 = vsel %vm1390, %v1392, %v1388
        %v1394 = vmul.f32 1.0, %v1393
        %v1395 = vrcp.pop %v1321
        %v1396 = vmul.f32 %v1321, %v1395
        %v1397 = vsub.f32 1.0, %v1396
        %v1398 = vmul.f32 %v1395, %v1397
        %v1399 = vadd.f32 %v1395, %v1398
        %vm1400 = vweird.f32 %v1321
        %vm1401 = vweird.f32 %v1395
        %vm1402 = vmor %vm1400, %vm1401
        %v1403 = vsel %vm1402, %v1395, %v1399
        %v1404 = vand.u32 2147483647, %v1321
        %vm1405 = vcmp.eq.f32.partialorder %v1404, 8.507059e+37
        %v1406 = vand.u32 %v1321, 2147483648
        %v1407 = vor.u32 1.1754944e-38, %v1406
        %v1408 = vsel %vm1405, %v1407, %v1403
        %v1409 = vmul.f32 1.0, %v1408
        %v1410 = vrcp.pop %v1322
        %v1411 = vmul.f32 %v1322, %v1410
        %v1412 = vsub.f32 1.0, %v1411
        %v1413 = vmul.f32 %v1410, %v1412
        %v1414 = vadd.f32 %v1410, %v1413
        %vm1415 = vweird.f32 %v1322
        %vm1416 = vweird.f32 %v1410
        %vm1417 = vmor %vm1415, %vm1416
        %v1418 = vsel %vm1417, %v1410, %v1414
        %v1419 = vand.u32 2147483647, %v1322
        %vm1420 = vcmp.eq.f32.partialorder %v1419, 8.507059e+37
        %v1421 = vand.u32 %v1322, 2147483648
        %v1422 = vor.u32 1.1754944e-38, %v1421
        %v1423 = vsel %vm1420, %v1422, %v1418
        %v1424 = vmul.f32 1.0, %v1423
        %v1425 = vrcp.pop %v1323
        %v1426 = vmul.f32 %v1323, %v1425
        %v1427 = vsub.f32 1.0, %v1426
        %v1428 = vmul.f32 %v1425, %v1427
        %v1429 = vadd.f32 %v1425, %v1428
        %vm1430 = vweird.f32 %v1323
        %vm1431 = vweird.f32 %v1425
        %vm1432 = vmor %vm1430, %vm1431
        %v1433 = vsel %vm1432, %v1425, %v1429
        %v1434 = vand.u32 2147483647, %v1323
        %vm1435 = vcmp.eq.f32.partialorder %v1434, 8.507059e+37
        %v1436 = vand.u32 %v1323, 2147483648
        %v1437 = vor.u32 1.1754944e-38, %v1436
        %v1438 = vsel %vm1435, %v1437, %v1433
        %v1439 = vmul.f32 1.0, %v1438
        %v1440 = vrcp.pop %v1324
        %v1441 = vmul.f32 %v1324, %v1440
        %v1442 = vsub.f32 1.0, %v1441
        %v1443 = vmul.f32 %v1440, %v1442
        %v1444 = vadd.f32 %v1440, %v1443
        %vm1445 = vweird.f32 %v1324
        %vm1446 = vweird.f32 %v1440
        %vm1447 = vmor %vm1445, %vm1446
        %v1448 = vsel %vm1447, %v1440, %v1444
        %v1449 = vand.u32 2147483647, %v1324
        %vm1450 = vcmp.eq.f32.partialorder %v1449, 8.507059e+37
        %v1451 = vand.u32 %v1324, 2147483648
        %v1452 = vor.u32 1.1754944e-38, %v1451
        %v1453 = vsel %vm1450, %v1452, %v1448
        %v1454 = vmul.f32 1.0, %v1453
        %v1455 = vrcp.pop %v1325
        %v1456 = vmul.f32 %v1325, %v1455
        %v1457 = vsub.f32 1.0, %v1456
        %v1458 = vmul.f32 %v1455, %v1457
        %v1459 = vadd.f32 %v1455, %v1458
        %vm1460 = vweird.f32 %v1325
        %vm1461 = vweird.f32 %v1455
        %vm1462 = vmor %vm1460, %vm1461
        %v1463 = vsel %vm1462, %v1455, %v1459
        %v1464 = vand.u32 2147483647, %v1325
        %vm1465 = vcmp.eq.f32.partialorder %v1464, 8.507059e+37
        %v1466 = vand.u32 %v1325, 2147483648
        %v1467 = vor.u32 1.1754944e-38, %v1466
        %v1468 = vsel %vm1465, %v1467, %v1463
        %v1469 = vmul.f32 1.0, %v1468
        %v1470 = vrcp.pop %v1326
        %v1471 = vmul.f32 %v1326, %v1470
        %v1472 = vsub.f32 1.0, %v1471
        %v1473 = vmul.f32 %v1470, %v1472
        %v1474 = vadd.f32 %v1470, %v1473
        %vm1475 = vweird.f32 %v1326
        %vm1476 = vweird.f32 %v1470
        %vm1477 = vmor %vm1475, %vm1476
        %v1478 = vsel %vm1477, %v1470, %v1474
        %v1479 = vand.u32 2147483647, %v1326
        %vm1480 = vcmp.eq.f32.partialorder %v1479, 8.507059e+37
        %v1481 = vand.u32 %v1326, 2147483648
        %v1482 = vor.u32 1.1754944e-38, %v1481
        %v1483 = vsel %vm1480, %v1482, %v1478
        %v1484 = vmul.f32 1.0, %v1483
        %v1485 = vrcp.pop %v1327
        %v1486 = vmul.f32 %v1327, %v1485
        %v1487 = vsub.f32 1.0, %v1486
        %v1488 = vmul.f32 %v1485, %v1487
        %v1489 = vadd.f32 %v1485, %v1488
        %vm1490 = vweird.f32 %v1327
        %vm1491 = vweird.f32 %v1485
        %vm1492 = vmor %vm1490, %vm1491
        %v1493 = vsel %vm1492, %v1485, %v1489
        %v1494 = vand.u32 2147483647, %v1327
        %vm1495 = vcmp.eq.f32.partialorder %v1494, 8.507059e+37
        %v1496 = vand.u32 %v1327, 2147483648
        %v1497 = vor.u32 1.1754944e-38, %v1496
        %v1498 = vsel %vm1495, %v1497, %v1493
        %v1499 = vmul.f32 1.0, %v1498
        %v1500 = vrcp.pop %v1328
        %v1501 = vmul.f32 %v1328, %v1500
        %v1502 = vsub.f32 1.0, %v1501
        %v1503 = vmul.f32 %v1500, %v1502
        %v1504 = vadd.f32 %v1500, %v1503
        %vm1505 = vweird.f32 %v1328
        %vm1506 = vweird.f32 %v1500
        %vm1507 = vmor %vm1505, %vm1506
        %v1508 = vsel %vm1507, %v1500, %v1504
        %v1509 = vand.u32 2147483647, %v1328
        %vm1510 = vcmp.eq.f32.partialorder %v1509, 8.507059e+37
        %v1511 = vand.u32 %v1328, 2147483648
        %v1512 = vor.u32 1.1754944e-38, %v1511
        %v1513 = vsel %vm1510, %v1512, %v1508
        %v1514 = vmul.f32 1.0, %v1513
        %v1515 = vrcp.pop %v1329
        %v1516 = vmul.f32 %v1329, %v1515
        %v1517 = vsub.f32 1.0, %v1516
        %v1518 = vmul.f32 %v1515, %v1517
        %v1519 = vadd.f32 %v1515, %v1518
        %vm1520 = vweird.f32 %v1329
        %vm1521 = vweird.f32 %v1515
        %vm1522 = vmor %vm1520, %vm1521
        %v1523 = vsel %vm1522, %v1515, %v1519
        %v1524 = vand.u32 2147483647, %v1329
        %vm1525 = vcmp.eq.f32.partialorder %v1524, 8.507059e+37
        %v1526 = vand.u32 %v1329, 2147483648
        %v1527 = vor.u32 1.1754944e-38, %v1526
        %v1528 = vsel %vm1525, %v1527, %v1523
        %v1529 = vmul.f32 1.0, %v1528
        %v1530 = vrcp.pop %v1330
        %v1531 = vmul.f32 %v1330, %v1530
        %v1532 = vsub.f32 1.0, %v1531
        %v1533 = vmul.f32 %v1530, %v1532
        %v1534 = vadd.f32 %v1530, %v1533
        %vm1535 = vweird.f32 %v1330
        %vm1536 = vweird.f32 %v1530
        %vm1537 = vmor %vm1535, %vm1536
        %v1538 = vsel %vm1537, %v1530, %v1534
        %v1539 = vand.u32 2147483647, %v1330
        %vm1540 = vcmp.eq.f32.partialorder %v1539, 8.507059e+37
        %v1541 = vand.u32 %v1330, 2147483648
        %v1542 = vor.u32 1.1754944e-38, %v1541
        %v1543 = vsel %vm1540, %v1542, %v1538
        %v1544 = vmul.f32 1.0, %v1543
        %v1545 = vrcp.pop %v1331
        %v1546 = vmul.f32 %v1331, %v1545
        %v1547 = vsub.f32 1.0, %v1546
        %v1548 = vmul.f32 %v1545, %v1547
        %v1549 = vadd.f32 %v1545, %v1548
        %vm1550 = vweird.f32 %v1331
        %vm1551 = vweird.f32 %v1545
        %vm1552 = vmor %vm1550, %vm1551
        %v1553 = vsel %vm1552, %v1545, %v1549
        %v1554 = vand.u32 2147483647, %v1331
        %vm1555 = vcmp.eq.f32.partialorder %v1554, 8.507059e+37
        %v1556 = vand.u32 %v1331, 2147483648
        %v1557 = vor.u32 1.1754944e-38, %v1556
        %v1558 = vsel %vm1555, %v1557, %v1553
        %v1559 = vmul.f32 1.0, %v1558
        %v1560 = vrcp.pop %v1332
        %v1561 = vmul.f32 %v1332, %v1560
        %v1562 = vsub.f32 1.0, %v1561
        %v1563 = vmul.f32 %v1560, %v1562
        %v1564 = vadd.f32 %v1560, %v1563
        %vm1565 = vweird.f32 %v1332
        %vm1566 = vweird.f32 %v1560
        %vm1567 = vmor %vm1565, %vm1566
        %v1568 = vsel %vm1567, %v1560, %v1564
        %v1569 = vand.u32 2147483647, %v1332
        %vm1570 = vcmp.eq.f32.partialorder %v1569, 8.507059e+37
        %v1571 = vand.u32 %v1332, 2147483648
        %v1572 = vor.u32 1.1754944e-38, %v1571
        %v1573 = vsel %vm1570, %v1572, %v1568
        %v1574 = vmul.f32 1.0, %v1573
        %v1575 = vrcp.pop %v1333
        %v1576 = vmul.f32 %v1333, %v1575
        %v1577 = vsub.f32 1.0, %v1576
        %v1578 = vmul.f32 %v1575, %v1577
        %v1579 = vadd.f32 %v1575, %v1578
        %vm1580 = vweird.f32 %v1333
        %vm1581 = vweird.f32 %v1575
        %vm1582 = vmor %vm1580, %vm1581
        %v1583 = vsel %vm1582, %v1575, %v1579
        %v1584 = vand.u32 2147483647, %v1333
        %vm1585 = vcmp.eq.f32.partialorder %v1584, 8.507059e+37
        %v1586 = vand.u32 %v1333, 2147483648
        %v1587 = vor.u32 1.1754944e-38, %v1586
        %v1588 = vsel %vm1585, %v1587, %v1583
        %v1589 = vmul.f32 1.0, %v1588
        %v1590 = vrcp.pop %v1334
        %v1591 = vmul.f32 %v1334, %v1590
        %v1592 = vsub.f32 1.0, %v1591
        %v1593 = vmul.f32 %v1590, %v1592
        %v1594 = vadd.f32 %v1590, %v1593
        %vm1595 = vweird.f32 %v1334
        %vm1596 = vweird.f32 %v1590
        %vm1597 = vmor %vm1595, %vm1596
        %v1598 = vsel %vm1597, %v1590, %v1594
        %v1599 = vand.u32 2147483647, %v1334
        %vm1600 = vcmp.eq.f32.partialorder %v1599, 8.507059e+37
        %v1601 = vand.u32 %v1334, 2147483648
        %v1602 = vor.u32 1.1754944e-38, %v1601
        %v1603 = vsel %vm1600, %v1602, %v1598
        %v1604 = vmul.f32 1.0, %v1603
        %v1605 = vrcp.pop %v1335
        %v1606 = vmul.f32 %v1335, %v1605
        %v1607 = vsub.f32 1.0, %v1606
        %v1608 = vmul.f32 %v1605, %v1607
        %v1609 = vadd.f32 %v1605, %v1608
        %vm1610 = vweird.f32 %v1335
        %vm1611 = vweird.f32 %v1605
        %vm1612 = vmor %vm1610, %vm1611
        %v1613 = vsel %vm1612, %v1605, %v1609
        %v1614 = vand.u32 2147483647, %v1335
        %vm1615 = vcmp.eq.f32.partialorder %v1614, 8.507059e+37
        %v1616 = vand.u32 %v1335, 2147483648
        %v1617 = vor.u32 1.1754944e-38, %v1616
        %v1618 = vsel %vm1615, %v1617, %v1613
        %v1619 = vmul.f32 1.0, %v1618
        %v1620 = vrcp.pop %v1336
        %v1621 = vmul.f32 %v1336, %v1620
        %v1622 = vsub.f32 1.0, %v1621
        %v1623 = vmul.f32 %v1620, %v1622
        %v1624 = vadd.f32 %v1620, %v1623
        %vm1625 = vweird.f32 %v1336
        %vm1626 = vweird.f32 %v1620
        %vm1627 = vmor %vm1625, %vm1626
        %v1628 = vsel %vm1627, %v1620, %v1624
        %v1629 = vand.u32 2147483647, %v1336
        %vm1630 = vcmp.eq.f32.partialorder %v1629, 8.507059e+37
        %v1631 = vand.u32 %v1336, 2147483648
        %v1632 = vor.u32 1.1754944e-38, %v1631
        %v1633 = vsel %vm1630, %v1632, %v1628
        %v1634 = vmul.f32 1.0, %v1633
        %v1635 = vrcp.pop %v1337
        %v1636 = vmul.f32 %v1337, %v1635
        %v1637 = vsub.f32 1.0, %v1636
        %v1638 = vmul.f32 %v1635, %v1637
        %v1639 = vadd.f32 %v1635, %v1638
        %vm1640 = vweird.f32 %v1337
        %vm1641 = vweird.f32 %v1635
        %vm1642 = vmor %vm1640, %vm1641
        %v1643 = vsel %vm1642, %v1635, %v1639
        %v1644 = vand.u32 2147483647, %v1337
        %vm1645 = vcmp.eq.f32.partialorder %v1644, 8.507059e+37
        %v1646 = vand.u32 %v1337, 2147483648
        %v1647 = vor.u32 1.1754944e-38, %v1646
        %v1648 = vsel %vm1645, %v1647, %v1643
        %v1649 = vmul.f32 1.0, %v1648
        %v1650 = vrcp.pop %v1338
        %v1651 = vmul.f32 %v1338, %v1650
        %v1652 = vsub.f32 1.0, %v1651
        %v1653 = vmul.f32 %v1650, %v1652
        %v1654 = vadd.f32 %v1650, %v1653
        %vm1655 = vweird.f32 %v1338
        %vm1656 = vweird.f32 %v1650
        %vm1657 = vmor %vm1655, %vm1656
        %v1658 = vsel %vm1657, %v1650, %v1654
        %v1659 = vand.u32 2147483647, %v1338
        %vm1660 = vcmp.eq.f32.partialorder %v1659, 8.507059e+37
        %v1661 = vand.u32 %v1338, 2147483648
        %v1662 = vor.u32 1.1754944e-38, %v1661
        %v1663 = vsel %vm1660, %v1662, %v1658
        %v1664 = vmul.f32 1.0, %v1663
        %v1665 = vrcp.pop %v1339
        %v1666 = vmul.f32 %v1339, %v1665
        %v1667 = vsub.f32 1.0, %v1666
        %v1668 = vmul.f32 %v1665, %v1667
        %v1669 = vadd.f32 %v1665, %v1668
        %vm1670 = vweird.f32 %v1339
        %vm1671 = vweird.f32 %v1665
        %vm1672 = vmor %vm1670, %vm1671
        %v1673 = vsel %vm1672, %v1665, %v1669
        %v1674 = vand.u32 2147483647, %v1339
        %vm1675 = vcmp.eq.f32.partialorder %v1674, 8.507059e+37
        %v1676 = vand.u32 %v1339, 2147483648
        %v1677 = vor.u32 1.1754944e-38, %v1676
        %v1678 = vsel %vm1675, %v1677, %v1673
        %v1679 = vmul.f32 1.0, %v1678
        %v1680 = vrcp.pop %v1340
        %v1681 = vmul.f32 %v1340, %v1680
        %v1682 = vsub.f32 1.0, %v1681
        %v1683 = vmul.f32 %v1680, %v1682
        %v1684 = vadd.f32 %v1680, %v1683
        %vm1685 = vweird.f32 %v1340
        %vm1686 = vweird.f32 %v1680
        %vm1687 = vmor %vm1685, %vm1686
        %v1688 = vsel %vm1687, %v1680, %v1684
        %v1689 = vand.u32 2147483647, %v1340
        %vm1690 = vcmp.eq.f32.partialorder %v1689, 8.507059e+37
        %v1691 = vand.u32 %v1340, 2147483648
        %v1692 = vor.u32 1.1754944e-38, %v1691
        %v1693 = vsel %vm1690, %v1692, %v1688
        %v1694 = vmul.f32 1.0, %v1693
        %v1695 = vrcp.pop %v1341
        %v1696 = vmul.f32 %v1341, %v1695
        %v1697 = vsub.f32 1.0, %v1696
        %v1698 = vmul.f32 %v1695, %v1697
        %v1699 = vadd.f32 %v1695, %v1698
        %vm1700 = vweird.f32 %v1341
        %vm1701 = vweird.f32 %v1695
        %vm1702 = vmor %vm1700, %vm1701
        %v1703 = vsel %vm1702, %v1695, %v1699
        %v1704 = vand.u32 2147483647, %v1341
        %vm1705 = vcmp.eq.f32.partialorder %v1704, 8.507059e+37
        %v1706 = vand.u32 %v1341, 2147483648
        %v1707 = vor.u32 1.1754944e-38, %v1706
        %v1708 = vsel %vm1705, %v1707, %v1703
        %v1709 = vmul.f32 1.0, %v1708
        %v1710 = vrcp.pop %v1342
        %v1711 = vmul.f32 %v1342, %v1710
        %v1712 = vsub.f32 1.0, %v1711
        %v1713 = vmul.f32 %v1710, %v1712
        %v1714 = vadd.f32 %v1710, %v1713
        %vm1715 = vweird.f32 %v1342
        %vm1716 = vweird.f32 %v1710
        %vm1717 = vmor %vm1715, %vm1716
        %v1718 = vsel %vm1717, %v1710, %v1714
        %v1719 = vand.u32 2147483647, %v1342
        %vm1720 = vcmp.eq.f32.partialorder %v1719, 8.507059e+37
        %v1721 = vand.u32 %v1342, 2147483648
        %v1722 = vor.u32 1.1754944e-38, %v1721
        %v1723 = vsel %vm1720, %v1722, %v1718
        %v1724 = vmul.f32 1.0, %v1723
        %v1725 = vrcp.pop %v1343
        %v1726 = vmul.f32 %v1343, %v1725
        %v1727 = vsub.f32 1.0, %v1726
        %v1728 = vmul.f32 %v1725, %v1727
        %v1729 = vadd.f32 %v1725, %v1728
        %vm1730 = vweird.f32 %v1343
        %vm1731 = vweird.f32 %v1725
        %vm1732 = vmor %vm1730, %vm1731
        %v1733 = vsel %vm1732, %v1725, %v1729
        %v1734 = vand.u32 2147483647, %v1343
        %vm1735 = vcmp.eq.f32.partialorder %v1734, 8.507059e+37
        %v1736 = vand.u32 %v1343, 2147483648
        %v1737 = vor.u32 1.1754944e-38, %v1736
        %v1738 = vsel %vm1735, %v1737, %v1733
        %v1739 = vmul.f32 1.0, %v1738
        %v1740 = vrcp.pop %v1344
        %v1741 = vmul.f32 %v1344, %v1740
        %v1742 = vsub.f32 1.0, %v1741
        %v1743 = vmul.f32 %v1740, %v1742
        %v1744 = vadd.f32 %v1740, %v1743
        %vm1745 = vweird.f32 %v1344
        %vm1746 = vweird.f32 %v1740
        %vm1747 = vmor %vm1745, %vm1746
        %v1748 = vsel %vm1747, %v1740, %v1744
        %v1749 = vand.u32 2147483647, %v1344
        %vm1750 = vcmp.eq.f32.partialorder %v1749, 8.507059e+37
        %v1751 = vand.u32 %v1344, 2147483648
        %v1752 = vor.u32 1.1754944e-38, %v1751
        %v1753 = vsel %vm1750, %v1752, %v1748
        %v1754 = vmul.f32 1.0, %v1753
        %v1755 = vrcp.pop %v1345
        %v1756 = vmul.f32 %v1345, %v1755
        %v1757 = vsub.f32 1.0, %v1756
        %v1758 = vmul.f32 %v1755, %v1757
        %v1759 = vadd.f32 %v1755, %v1758
        %vm1760 = vweird.f32 %v1345
        %vm1761 = vweird.f32 %v1755
        %vm1762 = vmor %vm1760, %vm1761
        %v1763 = vsel %vm1762, %v1755, %v1759
        %v1764 = vand.u32 2147483647, %v1345
        %vm1765 = vcmp.eq.f32.partialorder %v1764, 8.507059e+37
        %v1766 = vand.u32 %v1345, 2147483648
        %v1767 = vor.u32 1.1754944e-38, %v1766
        %v1768 = vsel %vm1765, %v1767, %v1763
        %v1769 = vmul.f32 1.0, %v1768
        %v1770 = vrcp.pop %v1346
        %v1771 = vmul.f32 %v1346, %v1770
        %v1772 = vsub.f32 1.0, %v1771
        %v1773 = vmul.f32 %v1770, %v1772
        %v1774 = vadd.f32 %v1770, %v1773
        %vm1775 = vweird.f32 %v1346
        %vm1776 = vweird.f32 %v1770
        %vm1777 = vmor %vm1775, %vm1776
        %v1778 = vsel %vm1777, %v1770, %v1774
        %v1779 = vand.u32 2147483647, %v1346
        %vm1780 = vcmp.eq.f32.partialorder %v1779, 8.507059e+37
        %v1781 = vand.u32 %v1346, 2147483648
        %v1782 = vor.u32 1.1754944e-38, %v1781
        %v1783 = vsel %vm1780, %v1782, %v1778
        %v1784 = vmul.f32 1.0, %v1783
        %v1785 = vrcp.pop %v1347
        %v1786 = vmul.f32 %v1347, %v1785
        %v1787 = vsub.f32 1.0, %v1786
        %v1788 = vmul.f32 %v1785, %v1787
        %v1789 = vadd.f32 %v1785, %v1788
        %vm1790 = vweird.f32 %v1347
        %vm1791 = vweird.f32 %v1785
        %vm1792 = vmor %vm1790, %vm1791
        %v1793 = vsel %vm1792, %v1785, %v1789
        %v1794 = vand.u32 2147483647, %v1347
        %vm1795 = vcmp.eq.f32.partialorder %v1794, 8.507059e+37
        %v1796 = vand.u32 %v1347, 2147483648
        %v1797 = vor.u32 1.1754944e-38, %v1796
        %v1798 = vsel %vm1795, %v1797, %v1793
        %v1799 = vmul.f32 1.0, %v1798
        %v1800 = vrcp.pop %v1348
        %v1801 = vmul.f32 %v1348, %v1800
        %v1802 = vsub.f32 1.0, %v1801
        %v1803 = vmul.f32 %v1800, %v1802
        %v1804 = vadd.f32 %v1800, %v1803
        %vm1805 = vweird.f32 %v1348
        %vm1806 = vweird.f32 %v1800
        %vm1807 = vmor %vm1805, %vm1806
        %v1808 = vsel %vm1807, %v1800, %v1804
        %v1809 = vand.u32 2147483647, %v1348
        %vm1810 = vcmp.eq.f32.partialorder %v1809, 8.507059e+37
        %v1811 = vand.u32 %v1348, 2147483648
        %v1812 = vor.u32 1.1754944e-38, %v1811
        %v1813 = vsel %vm1810, %v1812, %v1808
        %v1814 = vmul.f32 1.0, %v1813
        %v1815 = vrcp.pop %v1349
        %v1816 = vmul.f32 %v1349, %v1815
        %v1817 = vsub.f32 1.0, %v1816
        %v1818 = vmul.f32 %v1815, %v1817
        %v1819 = vadd.f32 %v1815, %v1818
        %vm1820 = vweird.f32 %v1349
        %vm1821 = vweird.f32 %v1815
        %vm1822 = vmor %vm1820, %vm1821
        %v1823 = vsel %vm1822, %v1815, %v1819
        %v1824 = vand.u32 2147483647, %v1349
        %vm1825 = vcmp.eq.f32.partialorder %v1824, 8.507059e+37
        %v1826 = vand.u32 %v1349, 2147483648
        %v1827 = vor.u32 1.1754944e-38, %v1826
        %v1828 = vsel %vm1825, %v1827, %v1823
        %v1829 = vmul.f32 1.0, %v1828
        %v1830 = vmul.f32 %v1190, %v1364
        %v1831 = vmul.f32 %v1191, %v1379
        %v1832 = vmul.f32 %v1192, %v1394
        %v1833 = vmul.f32 %v1193, %v1409
        %v1834 = vmul.f32 %v1194, %v1424
        %v1835 = vmul.f32 %v1195, %v1439
        %v1836 = vmul.f32 %v1196, %v1454
        %v1837 = vmul.f32 %v1197, %v1469
        %v1838 = vmul.f32 %v1198, %v1484
        %v1839 = vmul.f32 %v1199, %v1499
        %v1840 = vmul.f32 %v1200, %v1514
        %v1841 = vmul.f32 %v1201, %v1529
        %v1842 = vmul.f32 %v1202, %v1544
        %v1843 = vmul.f32 %v1203, %v1559
        %v1844 = vmul.f32 %v1204, %v1574
        %v1845 = vmul.f32 %v1205, %v1589
        %v1846 = vmul.f32 %v1206, %v1604
        %v1847 = vmul.f32 %v1207, %v1619
        %v1848 = vmul.f32 %v1208, %v1634
        %v1849 = vmul.f32 %v1209, %v1649
        %v1850 = vmul.f32 %v1210, %v1664
        %v1851 = vmul.f32 %v1211, %v1679
        %v1852 = vmul.f32 %v1212, %v1694
        %v1853 = vmul.f32 %v1213, %v1709
        %v1854 = vmul.f32 %v1214, %v1724
        %v1855 = vmul.f32 %v1215, %v1739
        %v1856 = vmul.f32 %v1216, %v1754
        %v1857 = vmul.f32 %v1217, %v1769
        %v1858 = vmul.f32 %v1218, %v1784
        %v1859 = vmul.f32 %v1219, %v1799
        %v1860 = vmul.f32 %v1220, %v1814
        %v1861 = vmul.f32 %v1221, %v1829
        %v1862 = vld [vmem:[%s3] sm:$0x3]
        %v1864 = vperm.slane %v1862, 0
        %v1865 = vperm.slane %v1862, 1
        %v1868 = vmul.f32 %v1830, %v1864
        %v1869 = vmul.f32 %v1831, %v1865
        %v1870 = vmul.f32 %v1832, %v1864
        %v1871 = vmul.f32 %v1833, %v1865
        %v1872 = vmul.f32 %v1834, %v1864
        %v1873 = vmul.f32 %v1835, %v1865
        %v1874 = vmul.f32 %v1836, %v1864
        %v1875 = vmul.f32 %v1837, %v1865
        %v1876 = vmul.f32 %v1838, %v1864
        %v1877 = vmul.f32 %v1839, %v1865
        %v1878 = vmul.f32 %v1840, %v1864
        %v1879 = vmul.f32 %v1841, %v1865
        %v1880 = vmul.f32 %v1842, %v1864
        %v1881 = vmul.f32 %v1843, %v1865
        %v1882 = vmul.f32 %v1844, %v1864
        %v1883 = vmul.f32 %v1845, %v1865
        %v1884 = vmul.f32 %v1846, %v1864
        %v1885 = vmul.f32 %v1847, %v1865
        %v1886 = vmul.f32 %v1848, %v1864
        %v1887 = vmul.f32 %v1849, %v1865
        %v1888 = vmul.f32 %v1850, %v1864
        %v1889 = vmul.f32 %v1851, %v1865
        %v1890 = vmul.f32 %v1852, %v1864
        %v1891 = vmul.f32 %v1853, %v1865
        %v1892 = vmul.f32 %v1854, %v1864
        %v1893 = vmul.f32 %v1855, %v1865
        %v1894 = vmul.f32 %v1856, %v1864
        %v1895 = vmul.f32 %v1857, %v1865
        %v1896 = vmul.f32 %v1858, %v1864
        %v1897 = vmul.f32 %v1859, %v1865
        %v1898 = vmul.f32 %v1860, %v1864
        %v1899 = vmul.f32 %v1861, %v1865
        %v1900 = vadd.f32 %v1868, %v1869
        %1901 = vadd.xlane.f32.xlu0 %v1900
        %v1902 = vpop.xlane.xlu0 %1901
        %v1903 = vadd.f32 %v1870, %v1871
        %1904 = vadd.xlane.f32.xlu0 %v1903
        %v1905 = vpop.xlane.xlu0 %1904
        %v1906 = vadd.f32 %v1872, %v1873
        %1907 = vadd.xlane.f32.xlu0 %v1906
        %v1908 = vpop.xlane.xlu0 %1907
        %v1909 = vadd.f32 %v1874, %v1875
        %1910 = vadd.xlane.f32.xlu0 %v1909
        %v1911 = vpop.xlane.xlu0 %1910
        %v1912 = vadd.f32 %v1876, %v1877
        %1913 = vadd.xlane.f32.xlu0 %v1912
        %v1914 = vpop.xlane.xlu0 %1913
        %v1915 = vadd.f32 %v1878, %v1879
        %1916 = vadd.xlane.f32.xlu0 %v1915
        %v1917 = vpop.xlane.xlu0 %1916
        %v1918 = vadd.f32 %v1880, %v1881
        %1919 = vadd.xlane.f32.xlu0 %v1918
        %v1920 = vpop.xlane.xlu0 %1919
        %v1921 = vadd.f32 %v1882, %v1883
        %1922 = vadd.xlane.f32.xlu0 %v1921
        %v1923 = vpop.xlane.xlu0 %1922
        %v1924 = vadd.f32 %v1884, %v1885
        %1925 = vadd.xlane.f32.xlu0 %v1924
        %v1926 = vpop.xlane.xlu0 %1925
        %v1927 = vadd.f32 %v1886, %v1887
        %1928 = vadd.xlane.f32.xlu0 %v1927
        %v1929 = vpop.xlane.xlu0 %1928
        %v1930 = vadd.f32 %v1888, %v1889
        %1931 = vadd.xlane.f32.xlu0 %v1930
        %v1932 = vpop.xlane.xlu0 %1931
        %v1933 = vadd.f32 %v1890, %v1891
        %1934 = vadd.xlane.f32.xlu0 %v1933
        %v1935 = vpop.xlane.xlu0 %1934
        %v1936 = vadd.f32 %v1892, %v1893
        %1937 = vadd.xlane.f32.xlu0 %v1936
        %v1938 = vpop.xlane.xlu0 %1937
        %v1939 = vadd.f32 %v1894, %v1895
        %1940 = vadd.xlane.f32.xlu0 %v1939
        %v1941 = vpop.xlane.xlu0 %1940
        %v1942 = vadd.f32 %v1896, %v1897
        %1943 = vadd.xlane.f32.xlu0 %v1942
        %v1944 = vpop.xlane.xlu0 %1943
        %v1945 = vadd.f32 %v1898, %v1899
        %1946 = vadd.xlane.f32.xlu0 %v1945
        %v1947 = vpop.xlane.xlu0 %1946
        %v1949 = vperm.slane %v350, 0
        %v1951 = vadd.f32 %v1902, %v1949
        %v1952 = vadd.f32 %v1905, %v1949
        %v1953 = vadd.f32 %v1908, %v1949
        %v1954 = vadd.f32 %v1911, %v1949
        %v1955 = vadd.f32 %v1914, %v1949
        %v1956 = vadd.f32 %v1917, %v1949
        %v1957 = vadd.f32 %v1920, %v1949
        %v1958 = vadd.f32 %v1923, %v1949
        %v1959 = vadd.f32 %v1926, %v1949
        %v1960 = vadd.f32 %v1929, %v1949
        %v1961 = vadd.f32 %v1932, %v1949
        %v1962 = vadd.f32 %v1935, %v1949
        %v1963 = vadd.f32 %v1938, %v1949
        %v1964 = vadd.f32 %v1941, %v1949
        %v1965 = vadd.f32 %v1944, %v1949
        %v1966 = vadd.f32 %v1947, %v1949
        %v1967 = vxor.u32 %v1951, 2147483648
        %v1968 = vxor.u32 %v1952, 2147483648
        %v1969 = vxor.u32 %v1953, 2147483648
        %v1970 = vxor.u32 %v1954, 2147483648
        %v1971 = vxor.u32 %v1955, 2147483648
        %v1972 = vxor.u32 %v1956, 2147483648
        %v1973 = vxor.u32 %v1957, 2147483648
        %v1974 = vxor.u32 %v1958, 2147483648
        %v1975 = vxor.u32 %v1959, 2147483648
        %v1976 = vxor.u32 %v1960, 2147483648
        %v1977 = vxor.u32 %v1961, 2147483648
        %v1978 = vxor.u32 %v1962, 2147483648
        %v1979 = vxor.u32 %v1963, 2147483648
        %v1980 = vxor.u32 %v1964, 2147483648
        %v1981 = vxor.u32 %v1965, 2147483648
        %v1982 = vxor.u32 %v1966, 2147483648
        %v1983 = vmul.f32 %v1967, 1.442695
        %v1984 = vpow.pop %v1983
        %v1985 = vmul.f32 %v1968, 1.442695
        %v1986 = vpow.pop %v1985
        %v1987 = vmul.f32 %v1969, 1.442695
        %v1988 = vpow.pop %v1987
        %v1989 = vmul.f32 %v1970, 1.442695
        %v1990 = vpow.pop %v1989
        %v1991 = vmul.f32 %v1971, 1.442695
        %v1992 = vpow.pop %v1991
        %v1993 = vmul.f32 %v1972, 1.442695
        %v1994 = vpow.pop %v1993
        %v1995 = vmul.f32 %v1973, 1.442695
        %v1996 = vpow.pop %v1995
        %v1997 = vmul.f32 %v1974, 1.442695
        %v1998 = vpow.pop %v1997
        %v1999 = vmul.f32 %v1975, 1.442695
        %v2000 = vpow.pop %v1999
        %v2001 = vmul.f32 %v1976, 1.442695
        %v2002 = vpow.pop %v2001
        %v2003 = vmul.f32 %v1977, 1.442695
        %v2004 = vpow.pop %v2003
        %v2005 = vmul.f32 %v1978, 1.442695
        %v2006 = vpow.pop %v2005
        %v2007 = vmul.f32 %v1979, 1.442695
        %v2008 = vpow.pop %v2007
        %v2009 = vmul.f32 %v1980, 1.442695
        %v2010 = vpow.pop %v2009
        %v2011 = vmul.f32 %v1981, 1.442695
        %v2012 = vpow.pop %v2011
        %v2013 = vmul.f32 %v1982, 1.442695
        %v2014 = vpow.pop %v2013
        %v2015 = vadd.f32 %v1984, 1.0
        %v2016 = vadd.f32 %v1986, 1.0
        %v2017 = vadd.f32 %v1988, 1.0
        %v2018 = vadd.f32 %v1990, 1.0
        %v2019 = vadd.f32 %v1992, 1.0
        %v2020 = vadd.f32 %v1994, 1.0
        %v2021 = vadd.f32 %v1996, 1.0
        %v2022 = vadd.f32 %v1998, 1.0
        %v2023 = vadd.f32 %v2000, 1.0
        %v2024 = vadd.f32 %v2002, 1.0
        %v2025 = vadd.f32 %v2004, 1.0
        %v2026 = vadd.f32 %v2006, 1.0
        %v2027 = vadd.f32 %v2008, 1.0
        %v2028 = vadd.f32 %v2010, 1.0
        %v2029 = vadd.f32 %v2012, 1.0
        %v2030 = vadd.f32 %v2014, 1.0
        %v2031 = vrcp.pop %v2015
        %v2032 = vmul.f32 %v2015, %v2031
        %v2033 = vsub.f32 1.0, %v2032
        %v2034 = vmul.f32 %v2031, %v2033
        %v2035 = vadd.f32 %v2031, %v2034
        %vm2036 = vweird.f32 %v2015
        %vm2037 = vweird.f32 %v2031
        %vm2038 = vmor %vm2036, %vm2037
        %v2039 = vsel %vm2038, %v2031, %v2035
        %v2040 = vand.u32 2147483647, %v2015
        %vm2041 = vcmp.eq.f32.partialorder %v2040, 8.507059e+37
        %v2042 = vand.u32 %v2015, 2147483648
        %v2043 = vor.u32 1.1754944e-38, %v2042
        %v2044 = vsel %vm2041, %v2043, %v2039
        %v2045 = vmul.f32 1.0, %v2044
        %v2046 = vrcp.pop %v2016
        %v2047 = vmul.f32 %v2016, %v2046
        %v2048 = vsub.f32 1.0, %v2047
        %v2049 = vmul.f32 %v2046, %v2048
        %v2050 = vadd.f32 %v2046, %v2049
        %vm2051 = vweird.f32 %v2016
        %vm2052 = vweird.f32 %v2046
        %vm2053 = vmor %vm2051, %vm2052
        %v2054 = vsel %vm2053, %v2046, %v2050
        %v2055 = vand.u32 2147483647, %v2016
        %vm2056 = vcmp.eq.f32.partialorder %v2055, 8.507059e+37
        %v2057 = vand.u32 %v2016, 2147483648
        %v2058 = vor.u32 1.1754944e-38, %v2057
        %v2059 = vsel %vm2056, %v2058, %v2054
        %v2060 = vmul.f32 1.0, %v2059
        %v2061 = vrcp.pop %v2017
        %v2062 = vmul.f32 %v2017, %v2061
        %v2063 = vsub.f32 1.0, %v2062
        %v2064 = vmul.f32 %v2061, %v2063
        %v2065 = vadd.f32 %v2061, %v2064
        %vm2066 = vweird.f32 %v2017
        %vm2067 = vweird.f32 %v2061
        %vm2068 = vmor %vm2066, %vm2067
        %v2069 = vsel %vm2068, %v2061, %v2065
        %v2070 = vand.u32 2147483647, %v2017
        %vm2071 = vcmp.eq.f32.partialorder %v2070, 8.507059e+37
        %v2072 = vand.u32 %v2017, 2147483648
        %v2073 = vor.u32 1.1754944e-38, %v2072
        %v2074 = vsel %vm2071, %v2073, %v2069
        %v2075 = vmul.f32 1.0, %v2074
        %v2076 = vrcp.pop %v2018
        %v2077 = vmul.f32 %v2018, %v2076
        %v2078 = vsub.f32 1.0, %v2077
        %v2079 = vmul.f32 %v2076, %v2078
        %v2080 = vadd.f32 %v2076, %v2079
        %vm2081 = vweird.f32 %v2018
        %vm2082 = vweird.f32 %v2076
        %vm2083 = vmor %vm2081, %vm2082
        %v2084 = vsel %vm2083, %v2076, %v2080
        %v2085 = vand.u32 2147483647, %v2018
        %vm2086 = vcmp.eq.f32.partialorder %v2085, 8.507059e+37
        %v2087 = vand.u32 %v2018, 2147483648
        %v2088 = vor.u32 1.1754944e-38, %v2087
        %v2089 = vsel %vm2086, %v2088, %v2084
        %v2090 = vmul.f32 1.0, %v2089
        %v2091 = vrcp.pop %v2019
        %v2092 = vmul.f32 %v2019, %v2091
        %v2093 = vsub.f32 1.0, %v2092
        %v2094 = vmul.f32 %v2091, %v2093
        %v2095 = vadd.f32 %v2091, %v2094
        %vm2096 = vweird.f32 %v2019
        %vm2097 = vweird.f32 %v2091
        %vm2098 = vmor %vm2096, %vm2097
        %v2099 = vsel %vm2098, %v2091, %v2095
        %v2100 = vand.u32 2147483647, %v2019
        %vm2101 = vcmp.eq.f32.partialorder %v2100, 8.507059e+37
        %v2102 = vand.u32 %v2019, 2147483648
        %v2103 = vor.u32 1.1754944e-38, %v2102
        %v2104 = vsel %vm2101, %v2103, %v2099
        %v2105 = vmul.f32 1.0, %v2104
        %v2106 = vrcp.pop %v2020
        %v2107 = vmul.f32 %v2020, %v2106
        %v2108 = vsub.f32 1.0, %v2107
        %v2109 = vmul.f32 %v2106, %v2108
        %v2110 = vadd.f32 %v2106, %v2109
        %vm2111 = vweird.f32 %v2020
        %vm2112 = vweird.f32 %v2106
        %vm2113 = vmor %vm2111, %vm2112
        %v2114 = vsel %vm2113, %v2106, %v2110
        %v2115 = vand.u32 2147483647, %v2020
        %vm2116 = vcmp.eq.f32.partialorder %v2115, 8.507059e+37
        %v2117 = vand.u32 %v2020, 2147483648
        %v2118 = vor.u32 1.1754944e-38, %v2117
        %v2119 = vsel %vm2116, %v2118, %v2114
        %v2120 = vmul.f32 1.0, %v2119
        %v2121 = vrcp.pop %v2021
        %v2122 = vmul.f32 %v2021, %v2121
        %v2123 = vsub.f32 1.0, %v2122
        %v2124 = vmul.f32 %v2121, %v2123
        %v2125 = vadd.f32 %v2121, %v2124
        %vm2126 = vweird.f32 %v2021
        %vm2127 = vweird.f32 %v2121
        %vm2128 = vmor %vm2126, %vm2127
        %v2129 = vsel %vm2128, %v2121, %v2125
        %v2130 = vand.u32 2147483647, %v2021
        %vm2131 = vcmp.eq.f32.partialorder %v2130, 8.507059e+37
        %v2132 = vand.u32 %v2021, 2147483648
        %v2133 = vor.u32 1.1754944e-38, %v2132
        %v2134 = vsel %vm2131, %v2133, %v2129
        %v2135 = vmul.f32 1.0, %v2134
        %v2136 = vrcp.pop %v2022
        %v2137 = vmul.f32 %v2022, %v2136
        %v2138 = vsub.f32 1.0, %v2137
        %v2139 = vmul.f32 %v2136, %v2138
        %v2140 = vadd.f32 %v2136, %v2139
        %vm2141 = vweird.f32 %v2022
        %vm2142 = vweird.f32 %v2136
        %vm2143 = vmor %vm2141, %vm2142
        %v2144 = vsel %vm2143, %v2136, %v2140
        %v2145 = vand.u32 2147483647, %v2022
        %vm2146 = vcmp.eq.f32.partialorder %v2145, 8.507059e+37
        %v2147 = vand.u32 %v2022, 2147483648
        %v2148 = vor.u32 1.1754944e-38, %v2147
        %v2149 = vsel %vm2146, %v2148, %v2144
        %v2150 = vmul.f32 1.0, %v2149
        %v2151 = vrcp.pop %v2023
        %v2152 = vmul.f32 %v2023, %v2151
        %v2153 = vsub.f32 1.0, %v2152
        %v2154 = vmul.f32 %v2151, %v2153
        %v2155 = vadd.f32 %v2151, %v2154
        %vm2156 = vweird.f32 %v2023
        %vm2157 = vweird.f32 %v2151
        %vm2158 = vmor %vm2156, %vm2157
        %v2159 = vsel %vm2158, %v2151, %v2155
        %v2160 = vand.u32 2147483647, %v2023
        %vm2161 = vcmp.eq.f32.partialorder %v2160, 8.507059e+37
        %v2162 = vand.u32 %v2023, 2147483648
        %v2163 = vor.u32 1.1754944e-38, %v2162
        %v2164 = vsel %vm2161, %v2163, %v2159
        %v2165 = vmul.f32 1.0, %v2164
        %v2166 = vrcp.pop %v2024
        %v2167 = vmul.f32 %v2024, %v2166
        %v2168 = vsub.f32 1.0, %v2167
        %v2169 = vmul.f32 %v2166, %v2168
        %v2170 = vadd.f32 %v2166, %v2169
        %vm2171 = vweird.f32 %v2024
        %vm2172 = vweird.f32 %v2166
        %vm2173 = vmor %vm2171, %vm2172
        %v2174 = vsel %vm2173, %v2166, %v2170
        %v2175 = vand.u32 2147483647, %v2024
        %vm2176 = vcmp.eq.f32.partialorder %v2175, 8.507059e+37
        %v2177 = vand.u32 %v2024, 2147483648
        %v2178 = vor.u32 1.1754944e-38, %v2177
        %v2179 = vsel %vm2176, %v2178, %v2174
        %v2180 = vmul.f32 1.0, %v2179
        %v2181 = vrcp.pop %v2025
        %v2182 = vmul.f32 %v2025, %v2181
        %v2183 = vsub.f32 1.0, %v2182
        %v2184 = vmul.f32 %v2181, %v2183
        %v2185 = vadd.f32 %v2181, %v2184
        %vm2186 = vweird.f32 %v2025
        %vm2187 = vweird.f32 %v2181
        %vm2188 = vmor %vm2186, %vm2187
        %v2189 = vsel %vm2188, %v2181, %v2185
        %v2190 = vand.u32 2147483647, %v2025
        %vm2191 = vcmp.eq.f32.partialorder %v2190, 8.507059e+37
        %v2192 = vand.u32 %v2025, 2147483648
        %v2193 = vor.u32 1.1754944e-38, %v2192
        %v2194 = vsel %vm2191, %v2193, %v2189
        %v2195 = vmul.f32 1.0, %v2194
        %v2196 = vrcp.pop %v2026
        %v2197 = vmul.f32 %v2026, %v2196
        %v2198 = vsub.f32 1.0, %v2197
        %v2199 = vmul.f32 %v2196, %v2198
        %v2200 = vadd.f32 %v2196, %v2199
        %vm2201 = vweird.f32 %v2026
        %vm2202 = vweird.f32 %v2196
        %vm2203 = vmor %vm2201, %vm2202
        %v2204 = vsel %vm2203, %v2196, %v2200
        %v2205 = vand.u32 2147483647, %v2026
        %vm2206 = vcmp.eq.f32.partialorder %v2205, 8.507059e+37
        %v2207 = vand.u32 %v2026, 2147483648
        %v2208 = vor.u32 1.1754944e-38, %v2207
        %v2209 = vsel %vm2206, %v2208, %v2204
        %v2210 = vmul.f32 1.0, %v2209
        %v2211 = vrcp.pop %v2027
        %v2212 = vmul.f32 %v2027, %v2211
        %v2213 = vsub.f32 1.0, %v2212
        %v2214 = vmul.f32 %v2211, %v2213
        %v2215 = vadd.f32 %v2211, %v2214
        %vm2216 = vweird.f32 %v2027
        %vm2217 = vweird.f32 %v2211
        %vm2218 = vmor %vm2216, %vm2217
        %v2219 = vsel %vm2218, %v2211, %v2215
        %v2220 = vand.u32 2147483647, %v2027
        %vm2221 = vcmp.eq.f32.partialorder %v2220, 8.507059e+37
        %v2222 = vand.u32 %v2027, 2147483648
        %v2223 = vor.u32 1.1754944e-38, %v2222
        %v2224 = vsel %vm2221, %v2223, %v2219
        %v2225 = vmul.f32 1.0, %v2224
        %v2226 = vrcp.pop %v2028
        %v2227 = vmul.f32 %v2028, %v2226
        %v2228 = vsub.f32 1.0, %v2227
        %v2229 = vmul.f32 %v2226, %v2228
        %v2230 = vadd.f32 %v2226, %v2229
        %vm2231 = vweird.f32 %v2028
        %vm2232 = vweird.f32 %v2226
        %vm2233 = vmor %vm2231, %vm2232
        %v2234 = vsel %vm2233, %v2226, %v2230
        %v2235 = vand.u32 2147483647, %v2028
        %vm2236 = vcmp.eq.f32.partialorder %v2235, 8.507059e+37
        %v2237 = vand.u32 %v2028, 2147483648
        %v2238 = vor.u32 1.1754944e-38, %v2237
        %v2239 = vsel %vm2236, %v2238, %v2234
        %v2240 = vmul.f32 1.0, %v2239
        %v2241 = vrcp.pop %v2029
        %v2242 = vmul.f32 %v2029, %v2241
        %v2243 = vsub.f32 1.0, %v2242
        %v2244 = vmul.f32 %v2241, %v2243
        %v2245 = vadd.f32 %v2241, %v2244
        %vm2246 = vweird.f32 %v2029
        %vm2247 = vweird.f32 %v2241
        %vm2248 = vmor %vm2246, %vm2247
        %v2249 = vsel %vm2248, %v2241, %v2245
        %v2250 = vand.u32 2147483647, %v2029
        %vm2251 = vcmp.eq.f32.partialorder %v2250, 8.507059e+37
        %v2252 = vand.u32 %v2029, 2147483648
        %v2253 = vor.u32 1.1754944e-38, %v2252
        %v2254 = vsel %vm2251, %v2253, %v2249
        %v2255 = vmul.f32 1.0, %v2254
        %v2256 = vrcp.pop %v2030
        %v2257 = vmul.f32 %v2030, %v2256
        %v2258 = vsub.f32 1.0, %v2257
        %v2259 = vmul.f32 %v2256, %v2258
        %v2260 = vadd.f32 %v2256, %v2259
        %vm2261 = vweird.f32 %v2030
        %vm2262 = vweird.f32 %v2256
        %vm2263 = vmor %vm2261, %vm2262
        %v2264 = vsel %vm2263, %v2256, %v2260
        %v2265 = vand.u32 2147483647, %v2030
        %vm2266 = vcmp.eq.f32.partialorder %v2265, 8.507059e+37
        %v2267 = vand.u32 %v2030, 2147483648
        %v2268 = vor.u32 1.1754944e-38, %v2267
        %v2269 = vsel %vm2266, %v2268, %v2264
        %v2270 = vmul.f32 1.0, %v2269
        %s2271 = smul.u32 %s18, 128
        %v2272 = vlaneseq
        %v2273 = vshrl.u32 %v2272, 7
        %v2274 = vadd.s32 %v2273, 8
        %v2275 = vadd.s32 %v2273, 16
        %v2276 = vadd.s32 %v2273, 24
        %v2277 = vadd.s32 %v2273, 32
        %v2278 = vadd.s32 %v2273, 40
        %v2279 = vadd.s32 %v2273, 48
        %v2280 = vadd.s32 %v2273, 56
        %v2281 = vadd.s32 %v2273, 64
        %v2282 = vadd.s32 %v2273, 72
        %v2283 = vadd.s32 %v2273, 80
        %v2284 = vadd.s32 %v2273, 88
        %v2285 = vadd.s32 %v2273, 96
        %v2286 = vadd.s32 %v2273, 104
        %v2287 = vadd.s32 %v2273, 112
        %v2288 = vadd.s32 %v2273, 120
        %v2289 = vstv %s2271
        %v2290 = vadd.s32 %v2289, %v2273
        %v2291 = vadd.s32 %v2289, %v2274
        %v2292 = vadd.s32 %v2289, %v2275
        %v2293 = vadd.s32 %v2289, %v2276
        %v2294 = vadd.s32 %v2289, %v2277
        %v2295 = vadd.s32 %v2289, %v2278
        %v2296 = vadd.s32 %v2289, %v2279
        %v2297 = vadd.s32 %v2289, %v2280
        %v2298 = vadd.s32 %v2289, %v2281
        %v2299 = vadd.s32 %v2289, %v2282
        %v2300 = vadd.s32 %v2289, %v2283
        %v2301 = vadd.s32 %v2289, %v2284
        %v2302 = vadd.s32 %v2289, %v2285
        %v2303 = vadd.s32 %v2289, %v2286
        %v2304 = vadd.s32 %v2289, %v2287
        %v2305 = vadd.s32 %v2289, %v2288
        %vm2306 = vcmp.lt.s32.totalorder %v2290, 500
        %vm2307 = vcmp.lt.s32.totalorder %v2291, 500
        %vm2308 = vcmp.lt.s32.totalorder %v2292, 500
        %vm2309 = vcmp.lt.s32.totalorder %v2293, 500
        %vm2310 = vcmp.lt.s32.totalorder %v2294, 500
        %vm2311 = vcmp.lt.s32.totalorder %v2295, 500
        %vm2312 = vcmp.lt.s32.totalorder %v2296, 500
        %vm2313 = vcmp.lt.s32.totalorder %v2297, 500
        %vm2314 = vcmp.lt.s32.totalorder %v2298, 500
        %vm2315 = vcmp.lt.s32.totalorder %v2299, 500
        %vm2316 = vcmp.lt.s32.totalorder %v2300, 500
        %vm2317 = vcmp.lt.s32.totalorder %v2301, 500
        %vm2318 = vcmp.lt.s32.totalorder %v2302, 500
        %vm2319 = vcmp.lt.s32.totalorder %v2303, 500
        %vm2320 = vcmp.lt.s32.totalorder %v2304, 500
        %vm2321 = vcmp.lt.s32.totalorder %v2305, 500
        %v2322 = vsel %vm2306, %v2045, -inf
        %v2323 = vsel %vm2307, %v2060, -inf
        %v2324 = vsel %vm2308, %v2075, -inf
        %v2325 = vsel %vm2309, %v2090, -inf
        %v2326 = vsel %vm2310, %v2105, -inf
        %v2327 = vsel %vm2311, %v2120, -inf
        %v2328 = vsel %vm2312, %v2135, -inf
        %v2329 = vsel %vm2313, %v2150, -inf
        %v2330 = vsel %vm2314, %v2165, -inf
        %v2331 = vsel %vm2315, %v2180, -inf
        %v2332 = vsel %vm2316, %v2195, -inf
        %v2333 = vsel %vm2317, %v2210, -inf
        %v2334 = vsel %vm2318, %v2225, -inf
        %v2335 = vsel %vm2319, %v2240, -inf
        %v2336 = vsel %vm2320, %v2255, -inf
        %v2337 = vsel %vm2321, %v2270, -inf
        %v2338 = vld [vmem:[#allocation2] sm:$0x1]
        %vm2339 = vcmask 7168
        %v2340 = vsel %vm2339, %v2322, -inf
        %v2341 = vsel %vm2339, %v2323, -inf
        %v2342 = vsel %vm2339, %v2324, -inf
        %v2343 = vsel %vm2339, %v2325, -inf
        %v2344 = vsel %vm2339, %v2326, -inf
        %v2345 = vmax.f32 %v2340, %v2344
        %v2346 = vsel %vm2339, %v2327, -inf
        %v2347 = vmax.f32 %v2341, %v2346
        %v2348 = vsel %vm2339, %v2328, -inf
        %v2349 = vmax.f32 %v2342, %v2348
        %v2350 = vsel %vm2339, %v2329, -inf
        %v2351 = vmax.f32 %v2343, %v2350
        %v2352 = vsel %vm2339, %v2330, -inf
        %v2353 = vmax.f32 %v2345, %v2352
        %v2354 = vsel %vm2339, %v2331, -inf
        %v2355 = vmax.f32 %v2347, %v2354
        %v2356 = vsel %vm2339, %v2332, -inf
        %v2357 = vmax.f32 %v2349, %v2356
        %v2358 = vsel %vm2339, %v2333, -inf
        %v2359 = vmax.f32 %v2351, %v2358
        %v2360 = vsel %vm2339, %v2334, -inf
        %v2361 = vmax.f32 %v2353, %v2360
        %v2362 = vsel %vm2339, %v2335, -inf
        %v2363 = vmax.f32 %v2355, %v2362
        %v2364 = vsel %vm2339, %v2336, -inf
        %v2365 = vmax.f32 %v2357, %v2364
        %v2366 = vsel %vm2339, %v2337, -inf
        %v2367 = vmax.f32 %v2359, %v2366
        %v2368 = vmax.f32 %v2361, %v2363
        %v2369 = vmax.f32 %v2365, %v2367
        %v2370 = vmax.f32 %v2368, %v2369
        %v2371 = vrot.slane %v2370, 4
        %v2372 = vmax.f32 %v2370, %v2371
        %v2373 = vrot.slane %v2372, 2
        %v2374 = vmax.f32 %v2372, %v2373
        %v2375 = vrot.slane %v2374, 1
        %v2376 = vmax.f32 %v2374, %v2375
        %v2377 = vmax.f32 %v2338, %v2376
        %v2378 = vsub.f32 %v2338, %v2377
        %v2379 = vmul.f32 %v2378, 1.442695
        %v2380 = vpow.pop %v2379
        %v2382 = vperm.slane %v2377, 0
        %v2384 = vsub.f32 %v2322, %v2382
        %v2385 = vsub.f32 %v2323, %v2382
        %v2386 = vsub.f32 %v2324, %v2382
        %v2387 = vsub.f32 %v2325, %v2382
        %v2388 = vsub.f32 %v2326, %v2382
        %v2389 = vsub.f32 %v2327, %v2382
        %v2390 = vsub.f32 %v2328, %v2382
        %v2391 = vsub.f32 %v2329, %v2382
        %v2392 = vsub.f32 %v2330, %v2382
        %v2393 = vsub.f32 %v2331, %v2382
        %v2394 = vsub.f32 %v2332, %v2382
        %v2395 = vsub.f32 %v2333, %v2382
        %v2396 = vsub.f32 %v2334, %v2382
        %v2397 = vsub.f32 %v2335, %v2382
        %v2398 = vsub.f32 %v2336, %v2382
        %v2399 = vsub.f32 %v2337, %v2382
        %v2400 = vmul.f32 %v2384, 1.442695
        %v2401 = vpow.pop %v2400
        %v2402 = vmul.f32 %v2385, 1.442695
        %v2403 = vpow.pop %v2402
        %v2404 = vmul.f32 %v2386, 1.442695
        %v2405 = vpow.pop %v2404
        %v2406 = vmul.f32 %v2387, 1.442695
        %v2407 = vpow.pop %v2406
        %v2408 = vmul.f32 %v2388, 1.442695
        %v2409 = vpow.pop %v2408
        %v2410 = vmul.f32 %v2389, 1.442695
        %v2411 = vpow.pop %v2410
        %v2412 = vmul.f32 %v2390, 1.442695
        %v2413 = vpow.pop %v2412
        %v2414 = vmul.f32 %v2391, 1.442695
        %v2415 = vpow.pop %v2414
        %v2416 = vmul.f32 %v2392, 1.442695
        %v2417 = vpow.pop %v2416
        %v2418 = vmul.f32 %v2393, 1.442695
        %v2419 = vpow.pop %v2418
        %v2420 = vmul.f32 %v2394, 1.442695
        %v2421 = vpow.pop %v2420
        %v2422 = vmul.f32 %v2395, 1.442695
        %v2423 = vpow.pop %v2422
        %v2424 = vmul.f32 %v2396, 1.442695
        %v2425 = vpow.pop %v2424
        %v2426 = vmul.f32 %v2397, 1.442695
        %v2427 = vpow.pop %v2426
        %v2428 = vmul.f32 %v2398, 1.442695
        %v2429 = vpow.pop %v2428
        %v2430 = vmul.f32 %v2399, 1.442695
        %v2431 = vpow.pop %v2430
        %v2432 = vld [vmem:[#allocation3] sm:$0x1]
        %v2433 = vmul.f32 %v2380, %v2432
        %v2434 = vsel %vm2339, %v2401, 0.0
        %v2435 = vsel %vm2339, %v2403, 0.0
        %v2436 = vadd.f32 %v2434, %v2435
        %v2437 = vsel %vm2339, %v2405, 0.0
        %v2438 = vadd.f32 %v2436, %v2437
        %v2439 = vsel %vm2339, %v2407, 0.0
        %v2440 = vadd.f32 %v2438, %v2439
        %v2441 = vsel %vm2339, %v2409, 0.0
        %v2442 = vadd.f32 %v2440, %v2441
        %v2443 = vsel %vm2339, %v2411, 0.0
        %v2444 = vadd.f32 %v2442, %v2443
        %v2445 = vsel %vm2339, %v2413, 0.0
        %v2446 = vadd.f32 %v2444, %v2445
        %v2447 = vsel %vm2339, %v2415, 0.0
        %v2448 = vadd.f32 %v2446, %v2447
        %v2449 = vsel %vm2339, %v2417, 0.0
        %v2450 = vadd.f32 %v2448, %v2449
        %v2451 = vsel %vm2339, %v2419, 0.0
        %v2452 = vadd.f32 %v2450, %v2451
        %v2453 = vsel %vm2339, %v2421, 0.0
        %v2454 = vadd.f32 %v2452, %v2453
        %v2455 = vsel %vm2339, %v2423, 0.0
        %v2456 = vadd.f32 %v2454, %v2455
        %v2457 = vsel %vm2339, %v2425, 0.0
        %v2458 = vadd.f32 %v2456, %v2457
        %v2459 = vsel %vm2339, %v2427, 0.0
        %v2460 = vadd.f32 %v2458, %v2459
        %v2461 = vsel %vm2339, %v2429, 0.0
        %v2462 = vadd.f32 %v2460, %v2461
        %v2463 = vsel %vm2339, %v2431, 0.0
        %v2464 = vadd.f32 %v2462, %v2463
        %v2465 = vrot.slane %v2464, 4
        %v2466 = vadd.f32 %v2464, %v2465
        %v2467 = vrot.slane %v2466, 2
        %v2468 = vadd.f32 %v2466, %v2467
        %v2469 = vrot.slane %v2468, 1
        %v2470 = vadd.f32 %v2468, %v2469
        %v2471 = vadd.f32 %v2433, %v2470
        %vm2472 = vcmask 0
        %2473 = vst.msk [vmem:[#allocation3] sm:$0x1] %vm2472, %v2471
        %v2474 = vld [vmem:[#allocation4] sm:$0x1]
        %2476 = vset.pattern.permute.xlu0 0
        %2477 = vperm.xlu0 %2476, %v2380
        %v2478 = vpop.permute.xlu0 %2477
        %v2480 = vperm.slane %v2478, 0
        %v2481 = vmul.f32 %v2480, %v2474
        %2483 = vset.pattern.permute.xlu0 0
        %2484 = vperm.xlu0 %2483, %v2401
        %v2485 = vpop.permute.xlu0 %2484
        %2488 = vset.pattern.permute.xlu0 0
        %2489 = vperm.xlu0 %2488, %v2403
        %v2490 = vpop.permute.xlu0 %2489
        %2493 = vset.pattern.permute.xlu0 0
        %2494 = vperm.xlu0 %2493, %v2405
        %v2495 = vpop.permute.xlu0 %2494
        %2498 = vset.pattern.permute.xlu0 0
        %2499 = vperm.xlu0 %2498, %v2407
        %v2500 = vpop.permute.xlu0 %2499
        %2503 = vset.pattern.permute.xlu0 0
        %2504 = vperm.xlu0 %2503, %v2409
        %v2505 = vpop.permute.xlu0 %2504
        %2508 = vset.pattern.permute.xlu0 0
        %2509 = vperm.xlu0 %2508, %v2411
        %v2510 = vpop.permute.xlu0 %2509
        %2513 = vset.pattern.permute.xlu0 0
        %2514 = vperm.xlu0 %2513, %v2413
        %v2515 = vpop.permute.xlu0 %2514
        %2518 = vset.pattern.permute.xlu0 0
        %2519 = vperm.xlu0 %2518, %v2415
        %v2520 = vpop.permute.xlu0 %2519
        %2523 = vset.pattern.permute.xlu0 0
        %2524 = vperm.xlu0 %2523, %v2417
        %v2525 = vpop.permute.xlu0 %2524
        %2528 = vset.pattern.permute.xlu0 0
        %2529 = vperm.xlu0 %2528, %v2419
        %v2530 = vpop.permute.xlu0 %2529
        %2533 = vset.pattern.permute.xlu0 0
        %2534 = vperm.xlu0 %2533, %v2421
        %v2535 = vpop.permute.xlu0 %2534
        %2538 = vset.pattern.permute.xlu0 0
        %2539 = vperm.xlu0 %2538, %v2423
        %v2540 = vpop.permute.xlu0 %2539
        %2543 = vset.pattern.permute.xlu0 0
        %2544 = vperm.xlu0 %2543, %v2425
        %v2545 = vpop.permute.xlu0 %2544
        %2548 = vset.pattern.permute.xlu0 0
        %2549 = vperm.xlu0 %2548, %v2427
        %v2550 = vpop.permute.xlu0 %2549
        %2553 = vset.pattern.permute.xlu0 0
        %2554 = vperm.xlu0 %2553, %v2429
        %v2555 = vpop.permute.xlu0 %2554
        %2558 = vset.pattern.permute.xlu0 0
        %2559 = vperm.xlu0 %2558, %v2431
        %v2560 = vpop.permute.xlu0 %2559
        %v2562 = vmul.f32 %v2485, %v793
        %v2563 = vmul.f32 %v2490, %v796
        %v2564 = vmul.f32 %v2495, %v799
        %v2565 = vmul.f32 %v2500, %v802
        %v2566 = vmul.f32 %v2505, %v805
        %v2567 = vmul.f32 %v2510, %v808
        %v2568 = vmul.f32 %v2515, %v811
        %v2569 = vmul.f32 %v2520, %v814
        %v2570 = vmul.f32 %v2525, %v817
        %v2571 = vmul.f32 %v2530, %v820
        %v2572 = vmul.f32 %v2535, %v823
        %v2573 = vmul.f32 %v2540, %v826
        %v2574 = vmul.f32 %v2545, %v829
        %v2575 = vmul.f32 %v2550, %v832
        %v2576 = vmul.f32 %v2555, %v835
        %v2577 = vmul.f32 %v2560, %v838
        %v2578 = vsel %vm881, %v2562, 0.0
        %v2579 = vsel %vm881, %v2563, 0.0
        %v2580 = vadd.f32 %v2578, %v2579
        %v2581 = vsel %vm881, %v2564, 0.0
        %v2582 = vadd.f32 %v2580, %v2581
        %v2583 = vsel %vm881, %v2565, 0.0
        %v2584 = vadd.f32 %v2582, %v2583
        %v2585 = vsel %vm881, %v2566, 0.0
        %v2586 = vadd.f32 %v2584, %v2585
        %v2587 = vsel %vm881, %v2567, 0.0
        %v2588 = vadd.f32 %v2586, %v2587
        %v2589 = vsel %vm881, %v2568, 0.0
        %v2590 = vadd.f32 %v2588, %v2589
        %v2591 = vsel %vm881, %v2569, 0.0
        %v2592 = vadd.f32 %v2590, %v2591
        %v2593 = vsel %vm881, %v2570, 0.0
        %v2594 = vadd.f32 %v2592, %v2593
        %v2595 = vsel %vm881, %v2571, 0.0
        %v2596 = vadd.f32 %v2594, %v2595
        %v2597 = vsel %vm881, %v2572, 0.0
        %v2598 = vadd.f32 %v2596, %v2597
        %v2599 = vsel %vm881, %v2573, 0.0
        %v2600 = vadd.f32 %v2598, %v2599
        %v2601 = vsel %vm881, %v2574, 0.0
        %v2602 = vadd.f32 %v2600, %v2601
        %v2603 = vsel %vm881, %v2575, 0.0
        %v2604 = vadd.f32 %v2602, %v2603
        %v2605 = vsel %vm881, %v2576, 0.0
        %v2606 = vadd.f32 %v2604, %v2605
        %v2607 = vsel %vm881, %v2577, 0.0
        %v2608 = vadd.f32 %v2606, %v2607
        %v2609 = vrot.slane %v2608, 4
        %v2610 = vadd.f32 %v2608, %v2609
        %v2611 = vrot.slane %v2610, 2
        %v2612 = vadd.f32 %v2610, %v2611
        %v2613 = vrot.slane %v2612, 1
        %v2614 = vadd.f32 %v2612, %v2613
        %v2615 = vadd.f32 %v2481, %v2614
        %vm2616 = vcmask 516096
        %2617 = vst.msk [vmem:[#allocation4] sm:$0x1] %vm2616, %v2615
        %2618 = vst.msk [vmem:[#allocation2] sm:$0x1] %vm2472, %v2377
        %p2619 = scmp.eq.s32.totalorder %s18, 3
        // Predicated region
        $region49: #{model_forward.1} parent=43 // pred_check
          %p2620 = pneg %p2619
        $region50: #{model_forward.1} parent=43 // pred_check_branch
          %2622 = sbr.rel (%p2620) target = $region52
        $region51: #{model_forward.1} parent=43 // pred_region
          %v2623 = vld [vmem:[#allocation4] sm:$0x1]
          %v2624 = vld [vmem:[#allocation3] sm:$0x1]
          %v2625 = vrcp.pop %v2624
          %2627 = vset.pattern.permute.xlu0 0
          %2628 = vperm.xlu0 %2627, %v2625
          %v2629 = vpop.permute.xlu0 %2628
          %v2631 = vperm.slane %v2629, 0
          %v2632 = vmul.f32 %v2623, %v2631
          %v2633 = vld [vmem:[%s5 + $0x6] sm:$0x1]
          %v2634 = vld [vmem:[%s4] sm:$0xff]
          %v2635 = vld [vmem:[%s4 + $0x8] sm:$0xff]
          %v2636 = vld [vmem:[%s4 + $0x10] sm:$0xff]
          %v2637 = vld [vmem:[%s4 + $0x18] sm:$0xff]
          %v2638 = vld [vmem:[%s4 + $0x20] sm:$0xff]
          %v2639 = vld [vmem:[%s4 + $0x28] sm:$0xff]
          %v2640 = vld [vmem:[%s4 + $0x30] sm:$0xff]
          %v2641 = vld [vmem:[%s4 + $0x38] sm:$0xff]
          %v2643 = vsel %vm881, %v2632, 0
          %2645 = vmatpush.msra.mxu0 0.0
          %2646 = vmatpush.msra.mxu0 0.0
          %2647 = vmatpush.msra.mxu0 0.0
          %2648 = vmatpush.msra.mxu0 0.0
          %2649 = vmatpush.msra.mxu0 0.0
          %2650 = vmatpush.msra.mxu0 0.0
          %2651 = vmatpush.msra.mxu0 0.0
          %2652 = vmatpush.msra.mxu0 0.0
          %2653 = vmatpush.msra.mxu0 %v2641
          %2654 = vmatpush.msra.mxu0 %v2640
          %2655 = vmatpush.msra.mxu0 %v2639
          %2656 = vmatpush.msra.mxu0 %v2638
          %2657 = vmatpush.msra.mxu0 %v2637
          %2658 = vmatpush.msra.mxu0 %v2636
          %2659 = vmatpush.msra.mxu0 %v2635
          %2660 = vmatpush.msra.mxu0 %v2634
          %2661 = vmatmul.f32.gmra.mxu0 %v2643
          %v2662 = vpop.f32.mrf.mxu0
          %v2663 = vadd.f32 %v2633, %v2662
          %2664 = vdwg.mxu0
          %vm2665 = vcmask 24576
          %2666 = vst.msk [vmem:[#allocation5] sm:$0x1] %vm2665, %v2663
        $region52: #{model_forward.1} parent=43 // pred_fallthru
          _
        // Predicated region
        $region53: #{model_forward.1} parent=43 // pred_check
          %p2667 = pneg %p162
        $region54: #{model_forward.1} parent=43 // pred_check_branch
          %2669 = sbr.rel (%p2667) target = $region56
        $region55: #{model_forward.1} parent=43 // pred_region
          %2671 = vsyncadd [#allocation6], 0
          %s2673 = sshll.u32 [#allocation5], 4
          %s2674 = int_to_ptr.vmem [resolvable:$true] %s2673
          %s2675 = sshll.u32 %s6, 4
          %s2676 = int_to_ptr.hbm [resolvable:$true] %s2675
          %2678 = dma.vmem_to_hbm [thread:$0]  %s2674, 16, %s2676, [#allocation6]
        $region56: #{model_forward.1} parent=43 // pred_fallthru
          _
        // Predicated region
        $region57: #{model_forward.1} parent=43 // pred_check
          %p2679 = pneg %p162
        $region58: #{model_forward.1} parent=43 // pred_check_branch
          %2681 = sbr.rel (%p2679) target = $region60
        $region59: #{model_forward.1} parent=43 // pred_region
          %2683 = dma.done [#allocation6], 16
        $region60: #{model_forward.1} parent=43 // pred_fallthru
          _
      $region44: #{model_forward.1} parent=5 // pred_fallthru
        _
      %p2684 = scmp.le.s32.totalorder 2, %s13
      // Predicated region
      $region61: #{model_forward.1} parent=5 // pred_check
        %p2685 = pneg %p2684
      $region62: #{model_forward.1} parent=5 // pred_check_branch
        %2687 = sbr.rel (%p2685) target = $region64
      $region63: #{model_forward.1} parent=5 // pred_region
        %s2688 = ssub.s32 %s13, 2
      $region64: #{model_forward.1} parent=5 // pred_fallthru
        _
    $region6: #{model_forward.1} parent=1 // loop_footer
      %s17 = sadd.s32 1, %s13
    $region7: #{model_forward.1} parent=1 // loop_footer_branch
      %12 = sbr.rel target = $region3
    $region8: #{model_forward.1} parent=1 // loop_exit
      _
    %2689 = vsyncpa [#allocation6], 1
    %s2690 = scalar_lea.sflag [#allocation6], 1
    %2691 = vsyncpa %s2690, 1

</llo_original>
